<compile_context>
chip_gen: v7x
topology: tpu7x:2x2x1
jax: 0.10.0
libtpu: 0.0.40
codegen_flags: <defaults>
</compile_context>

<pallas_src>
import functools

import numpy as np

import jax
import jax.numpy as jnp
from jax.experimental import pallas as pl
from jax.experimental.pallas import tpu as pltpu


# ----------------------------- elementwise helpers -----------------------------
def hardswish(x):
    return x * jnp.clip(x + 3.0, 0.0, 6.0) * (1.0 / 6.0)


def hardsigmoid(x):
    return jnp.clip(x + 3.0, 0.0, 6.0) * (1.0 / 6.0)


# ----------------------------- fused Pallas kernel -----------------------------
def _inverted_residual_kernel(x_ref, mask_ref, w_exp_ref, b1_ref, w_dw_ref, b2_ref,
                              w_se1_t_ref, b_se1_ref, w_se2_ref, b_se2_ref,
                              w_proj_ref, b3_ref, o_ref, *, H, W):
    """Per-image fused block.  Layout: channels on sublanes, flattened H*W on lanes."""
    HW = H * W
    x = x_ref[0]                                   # (Cin, HW) f32 (kept for residual)
    xb = x.astype(jnp.bfloat16)

    # --- 1) expand 1x1 conv (BN scale folded into weight) + bias + hardswish ---
    h = jnp.dot(w_exp_ref[...].astype(jnp.bfloat16), xb,
                preferred_element_type=jnp.float32)          # (Cexp, HW)
    h = hardswish(h + b1_ref[...])

    # --- 2) depthwise 3x3, stride=1, dilation=1 (BN folded) + hardswish ---
    # tap value at flat position p is h[p + dh*W + dw]; pltpu.roll brings it in place
    # (XLU lane rotate) and the precomputed 0/1 mask zeroes the wrapped halo.
    masks = mask_ref[...]                          # (9, HW) f32 in {0, 1}
    wdw = w_dw_ref[...]                            # (Cexp, 9) f32, column t = kh*3 + kw
    acc = jnp.zeros_like(h)
    t = 0
    for dh in (-1, 0, 1):
        for dw in (-1, 0, 1):
            delta = dh * W + dw
            if delta == 0:
                tap = h
            else:
                tap = pltpu.roll(h, shift=(-delta) % HW, axis=1) * masks[t:t + 1, :]
            acc = acc + tap * wdw[:, t:t + 1]
            t += 1
    h2 = hardswish(acc + b2_ref[...])              # (Cexp, HW)

    # --- 3) squeeze-excitation: avgpool -> fc1 -> ReLU -> fc2 -> hardsigmoid ---
    # Tiny FCs: VPU broadcast-multiply + reduce (avoid 1-wide MXU operands).
    pooled = jnp.sum(h2, axis=1, keepdims=True) * (1.0 / HW)            # (Cexp, 1)
    z = jnp.sum(w_se1_t_ref[...] * pooled, axis=0, keepdims=True)       # (1, Csq)
    z = jnp.maximum(z + b_se1_ref[...], 0.0)
    g = jnp.sum(w_se2_ref[...] * z, axis=1, keepdims=True)              # (Cexp, 1)
    g = hardsigmoid(g + b_se2_ref[...])
    h3 = h2 * g                                                         # gate

    # --- 4) project 1x1 conv (BN folded) + bias + residual add ---
    y = jnp.dot(w_proj_ref[...].astype(jnp.bfloat16), h3.astype(jnp.bfloat16),
                preferred_element_type=jnp.float32)          # (Cout, HW)
    o_ref[0] = (y + b3_ref[...] + x).astype(o_ref.dtype)


def _make_tap_masks(H, W):
    """mask[t, p] = 1 if the 3x3 tap t=(dh+1)*3+(dw+1) at flat pos p stays in-bounds."""
    pos = np.arange(H * W)
    yy, xx = pos // W, pos % W
    masks = np.zeros((9, H * W), np.float32)
    t = 0
    for dh in (-1, 0, 1):
        for dw in (-1, 0, 1):
            valid = (yy + dh >= 0) & (yy + dh < H) & (xx + dw >= 0) & (xx + dw < W)
            masks[t] = valid.astype(np.float32)
            t += 1
    return jnp.asarray(masks)


# ----------------------------- wrapper -----------------------------
def inverted_residual_forward(x_nchw, p):
    """Pallas implementation of InvertedResidual.forward (stride=1, use_se, HS, res-connect)."""
    N, Cin, H, W = x_nchw.shape
    HW = H * W
    Cexp = p["w_exp_s"].shape[0]
    Cout = p["w_proj_s"].shape[0]
    Csq = p["w_se1_t"].shape[1]
    assert Cout == Cin, "use_res_connect requires Cin == Cout"
    assert HW % 128 == 0, "flattened spatial dim must be lane-dense"

    x = x_nchw.reshape(N, Cin, HW)                 # free view: NCHW -> (N, C, H*W)
    masks = _make_tap_masks(H, W)

    kernel = functools.partial(_inverted_residual_kernel, H=H, W=W)
    const2 = lambda n: (0, 0)

    out = pl.pallas_call(
        kernel,
        out_shape=jax.ShapeDtypeStruct((N, Cout, HW), x_nchw.dtype),
        grid_spec=pltpu.PrefetchScalarGridSpec(
            num_scalar_prefetch=0,
            grid=(N,),
            in_specs=[
                pl.BlockSpec((1, Cin, HW), lambda n: (n, 0, 0)),   # x
                pl.BlockSpec((9, HW), const2),                     # tap masks
                pl.BlockSpec((Cexp, Cin), const2),                 # w_exp (BN folded)
                pl.BlockSpec((Cexp, 1), const2),                   # b1
                pl.BlockSpec((Cexp, 9), const2),                   # w_dw (BN folded)
                pl.BlockSpec((Cexp, 1), const2),                   # b2
                pl.BlockSpec((Cexp, Csq), const2),                 # w_se1^T
                pl.BlockSpec((1, Csq), const2),                    # b_se1
                pl.BlockSpec((Cexp, Csq), const2),                 # w_se2
                pl.BlockSpec((Cexp, 1), const2),                   # b_se2
                pl.BlockSpec((Cout, Cexp), const2),                # w_proj (BN folded)
                pl.BlockSpec((Cout, 1), const2),                   # b3
            ],
            out_specs=pl.BlockSpec((1, Cout, HW), lambda n: (n, 0, 0)),
        ),
        compiler_params=pltpu.CompilerParams(
            dimension_semantics=("parallel",)),
    )(x, masks, p["w_exp_s"], p["b1"], p["w_dw_s"], p["b2"],
      p["w_se1_t"], p["b_se1"], p["w_se2"], p["b_se2"], p["w_proj_s"], p["b3"])

    return out.reshape(N, Cout, H, W)


# ----------------------------- pure-JAX reference -----------------------------
def reference_forward(x_nchw, p):
    N, Cin, H, W = x_nchw.shape
    x = x_nchw.astype(jnp.float32)

    # expand 1x1 (bf16 operands, f32 accumulation — same as the kernel)
    h = jnp.einsum("oc,nchw->nohw",
                   p["w_exp_s"].astype(jnp.bfloat16), x.astype(jnp.bfloat16),
                   preferred_element_type=jnp.float32)
    h = hardswish(h + p["b1"].reshape(1, -1, 1, 1))

    # depthwise 3x3 (exact f32)
    hp = jnp.pad(h, ((0, 0), (0, 0), (1, 1), (1, 1)))
    wdw = p["w_dw_s"].reshape(-1, 3, 3)
    acc = jnp.zeros_like(h)
    for kh in range(3):
        for kw in range(3):
            acc = acc + hp[:, :, kh:kh + H, kw:kw + W] * wdw[:, kh, kw][None, :, None, None]
    h2 = hardswish(acc + p["b2"].reshape(1, -1, 1, 1))

    # squeeze-excitation (exact f32, same math as the kernel's VPU path)
    pooled = h2.mean(axis=(2, 3))                                          # (N, Cexp)
    z = jnp.sum(p["w_se1_t"][None] * pooled[:, :, None], axis=1) + p["b_se1"]
    z = jnp.maximum(z, 0.0)                                                # (N, Csq)
    g = jnp.sum(p["w_se2"][None] * z[:, None, :], axis=2) + p["b_se2"].reshape(1, -1)
    g = hardsigmoid(g)                                                     # (N, Cexp)
    h3 = h2 * g[:, :, None, None]

    # project 1x1 + residual
    y = jnp.einsum("oc,nchw->nohw",
                   p["w_proj_s"].astype(jnp.bfloat16), h3.astype(jnp.bfloat16),
                   preferred_element_type=jnp.float32)
    return (y + p["b3"].reshape(1, -1, 1, 1) + x).astype(x_nchw.dtype)


# ----------------------------- parameter init -----------------------------
def make_params(key, cin=16, cexp=64, csq=16, eps=1e-5):
    ks = jax.random.split(key, 12)

    def bn_fold(kg, kb, c):
        gamma = jax.random.uniform(kg, (c,), jnp.float32, 0.5, 1.5)
        beta = 0.05 * jax.random.normal(kb, (c,), jnp.float32)
        running_mean = jnp.zeros((c,), jnp.float32)
        running_var = jnp.ones((c,), jnp.float32)
        scale = gamma / jnp.sqrt(running_var + eps)
        bias = beta - running_mean * scale
        return scale, bias

    s1, b1 = bn_fold(ks[0], ks[1], cexp)
    s2, b2 = bn_fold(ks[2], ks[3], cexp)
    s3, b3 = bn_fold(ks[4], ks[5], cin)

    # PyTorch-layout conv weights, with the eval-mode BN scale folded in host-side.
    w_exp = 0.1 * jax.random.normal(ks[6], (cexp, cin), jnp.float32)    # (Cexp,Cin,1,1)
    w_dw = 0.1 * jax.random.normal(ks[7], (cexp, 3, 3), jnp.float32)    # (Cexp,1,3,3)
    w_se1 = 0.1 * jax.random.normal(ks[8], (csq, cexp), jnp.float32)    # fc1 (Csq,Cexp,1,1)
    w_se2 = 0.1 * jax.random.normal(ks[10], (cexp, csq), jnp.float32)   # fc2 (Cexp,Csq,1,1)
    w_proj = 0.1 * jax.random.normal(jax.random.fold_in(key, 99),
                                     (cin, cexp), jnp.float32)          # (Cout,Cexp,1,1)

    return {
        "w_exp_s": w_exp * s1[:, None],                               # (Cexp, Cin)
        "b1": b1.reshape(cexp, 1),
        "w_dw_s": (w_dw * s2[:, None, None]).reshape(cexp, 9),        # (Cexp, 9), t=kh*3+kw
        "b2": b2.reshape(cexp, 1),
        "w_se1_t": w_se1.T,                                           # (Cexp, Csq)
        "b_se1": 0.05 * jax.random.normal(ks[9], (csq,), jnp.float32).reshape(1, csq),
        "w_se2": w_se2,                                               # (Cexp, Csq)
        "b_se2": 0.05 * jax.random.normal(ks[11], (cexp,), jnp.float32).reshape(cexp, 1),
        "w_proj_s": w_proj * s3[:, None],                             # (Cout, Cexp)
        "b3": b3.reshape(cin, 1),
    }


if __name__ == "__main__":
    key = jax.random.PRNGKey(0)
    k_x, k_p = jax.random.split(key)

    N, Cin, H, W = 2, 16, 16, 16          # PyTorch-style NCHW input
    x = jax.random.normal(k_x, (N, Cin, H, W), jnp.float32)
    params = make_params(k_p, cin=Cin, cexp=64, csq=16)

    fwd = jax.jit(inverted_residual_forward)
    out = jax.block_until_ready(fwd(x, params))
    ref = jax.block_until_ready(reference_forward(x, params))

    assert out.shape == (N, Cin, H, W), out.shape
    max_err = float(jnp.max(jnp.abs(out - ref)))
    assert max_err < 5e-3, max_err
    print("KERNEL_OK")
</pallas_src>

<mosaic_0001>
module attributes {stable_mosaic.version = 11 : i64} {
  func.func @_inverted_residual_kernel(%arg0: i32, %arg1: memref<1x16x256xf32, #tpu.memory_space<vmem>>, %arg2: memref<9x256xf32, #tpu.memory_space<vmem>>, %arg3: memref<64x16xf32, #tpu.memory_space<vmem>>, %arg4: memref<64x1xf32, #tpu.memory_space<vmem>>, %arg5: memref<64x9xf32, #tpu.memory_space<vmem>>, %arg6: memref<64x1xf32, #tpu.memory_space<vmem>>, %arg7: memref<64x16xf32, #tpu.memory_space<vmem>>, %arg8: memref<1x16xf32, #tpu.memory_space<vmem>>, %arg9: memref<64x16xf32, #tpu.memory_space<vmem>>, %arg10: memref<64x1xf32, #tpu.memory_space<vmem>>, %arg11: memref<16x64xf32, #tpu.memory_space<vmem>>, %arg12: memref<16x1xf32, #tpu.memory_space<vmem>>, %arg13: memref<1x16x256xf32, #tpu.memory_space<vmem>>) attributes {dimension_semantics = [#tpu.dimension_semantics<parallel>], iteration_bounds = array<i64: 2>, scalar_prefetch = 0 : i64, scratch_operands = 0 : i64, tpu.core_type = #tpu.core_type<tc>, window_params = [{transform_indices = @transform_0, window_bounds = array<i64: 1, 16, 256>}, {pipeline_mode = #tpu.pipeline_mode<synchronous>, transform_indices = @transform_1, window_bounds = array<i64: 9, 256>}, {pipeline_mode = #tpu.pipeline_mode<synchronous>, transform_indices = @transform_2, window_bounds = array<i64: 64, 16>}, {pipeline_mode = #tpu.pipeline_mode<synchronous>, transform_indices = @transform_3, window_bounds = array<i64: 64, 1>}, {pipeline_mode = #tpu.pipeline_mode<synchronous>, transform_indices = @transform_4, window_bounds = array<i64: 64, 9>}, {pipeline_mode = #tpu.pipeline_mode<synchronous>, transform_indices = @transform_5, window_bounds = array<i64: 64, 1>}, {pipeline_mode = #tpu.pipeline_mode<synchronous>, transform_indices = @transform_6, window_bounds = array<i64: 64, 16>}, {pipeline_mode = #tpu.pipeline_mode<synchronous>, transform_indices = @transform_7, window_bounds = array<i64: 1, 16>}, {pipeline_mode = #tpu.pipeline_mode<synchronous>, transform_indices = @transform_8, window_bounds = array<i64: 64, 16>}, {pipeline_mode = #tpu.pipeline_mode<synchronous>, transform_indices = @transform_9, window_bounds = array<i64: 64, 1>}, {pipeline_mode = #tpu.pipeline_mode<synchronous>, transform_indices = @transform_10, window_bounds = array<i64: 16, 64>}, {pipeline_mode = #tpu.pipeline_mode<synchronous>, transform_indices = @transform_11, window_bounds = array<i64: 16, 1>}, {transform_indices = @transform_12, window_bounds = array<i64: 1, 16, 256>}]} {
    %c0 = arith.constant 0 : index
    %c0_0 = arith.constant 0 : index
    %c0_1 = arith.constant 0 : index
    %0 = vector.load %arg1[%c0, %c0_0, %c0_1] : memref<1x16x256xf32, #tpu.memory_space<vmem>>, vector<1x16x256xf32>
    %1 = vector.shape_cast %0 : vector<1x16x256xf32> to vector<16x256xf32>
    %2 = arith.truncf %1 : vector<16x256xf32> to vector<16x256xbf16>
    %c0_2 = arith.constant 0 : index
    %c0_3 = arith.constant 0 : index
    %3 = vector.load %arg3[%c0_2, %c0_3] : memref<64x16xf32, #tpu.memory_space<vmem>>, vector<64x16xf32>
    %4 = arith.truncf %3 : vector<64x16xf32> to vector<64x16xbf16>
    %cst = arith.constant dense<0.000000e+00> : vector<64x256xf32>
    %5 = tpu.matmul %4, %2, %cst {dimension_numbers = #tpu.dot_dimension_numbers<[1], [0], [0], [1], [0, 0, 1, 1], [], []>} : vector<64x16xbf16>, vector<16x256xbf16>, vector<64x256xf32> -> vector<64x256xf32>
    %c0_4 = arith.constant 0 : index
    %c0_5 = arith.constant 0 : index
    %6 = vector.load %arg4[%c0_4, %c0_5] : memref<64x1xf32, #tpu.memory_space<vmem>>, vector<64x1xf32>
    %7 = vector.broadcast %6 : vector<64x1xf32> to vector<64x256xf32>
    %8 = arith.addf %5, %7 : vector<64x256xf32>
    %cst_6 = arith.constant 3.000000e+00 : f32
    %9 = vector.broadcast %cst_6 : f32 to vector<64x256xf32>
    %10 = arith.addf %8, %9 : vector<64x256xf32>
    %cst_7 = arith.constant 0.000000e+00 : f32
    %cst_8 = arith.constant 6.000000e+00 : f32
    %11 = vector.broadcast %cst_7 : f32 to vector<64x256xf32>
    %12 = arith.maximumf %11, %10 : vector<64x256xf32>
    %13 = vector.broadcast %cst_8 : f32 to vector<64x256xf32>
    %14 = arith.minimumf %13, %12 : vector<64x256xf32>
    %15 = arith.mulf %8, %14 : vector<64x256xf32>
    %cst_9 = arith.constant 0.166666672 : f32
    %16 = vector.broadcast %cst_9 : f32 to vector<64x256xf32>
    %17 = arith.mulf %15, %16 : vector<64x256xf32>
    %c0_10 = arith.constant 0 : index
    %c0_11 = arith.constant 0 : index
    %18 = vector.load %arg2[%c0_10, %c0_11] : memref<9x256xf32, #tpu.memory_space<vmem>>, vector<9x256xf32>
    %c0_12 = arith.constant 0 : index
    %c0_13 = arith.constant 0 : index
    %19 = vector.load %arg5[%c0_12, %c0_13] : memref<64x9xf32, #tpu.memory_space<vmem>>, vector<64x9xf32>
    %cst_14 = arith.constant 0.000000e+00 : f32
    %20 = vector.broadcast %cst_14 : f32 to vector<64x256xf32>
    %c17_i32 = arith.constant 17 : i32
    %21 = tpu.dynamic_rotate %17 by %c17_i32 dim 1 : vector<64x256xf32>, i32 -> vector<64x256xf32>
    %22 = vector.extract_strided_slice %18 {offsets = [0, 0], sizes = [1, 256], strides = [1, 1]} : vector<9x256xf32> to vector<1x256xf32>
    %23 = vector.broadcast %22 : vector<1x256xf32> to vector<64x256xf32>
    %24 = arith.mulf %21, %23 : vector<64x256xf32>
    %25 = vector.extract_strided_slice %19 {offsets = [0, 0], sizes = [64, 1], strides = [1, 1]} : vector<64x9xf32> to vector<64x1xf32>
    %26 = vector.broadcast %25 : vector<64x1xf32> to vector<64x256xf32>
    %27 = arith.mulf %24, %26 : vector<64x256xf32>
    %28 = arith.addf %20, %27 : vector<64x256xf32>
    %c16_i32 = arith.constant 16 : i32
    %29 = tpu.dynamic_rotate %17 by %c16_i32 dim 1 : vector<64x256xf32>, i32 -> vector<64x256xf32>
    %30 = vector.extract_strided_slice %18 {offsets = [1, 0], sizes = [1, 256], strides = [1, 1]} : vector<9x256xf32> to vector<1x256xf32>
    %31 = vector.broadcast %30 : vector<1x256xf32> to vector<64x256xf32>
    %32 = arith.mulf %29, %31 : vector<64x256xf32>
    %33 = vector.extract_strided_slice %19 {offsets = [0, 1], sizes = [64, 1], strides = [1, 1]} : vector<64x9xf32> to vector<64x1xf32>
    %34 = vector.broadcast %33 : vector<64x1xf32> to vector<64x256xf32>
    %35 = arith.mulf %32, %34 : vector<64x256xf32>
    %36 = arith.addf %28, %35 : vector<64x256xf32>
    %c15_i32 = arith.constant 15 : i32
    %37 = tpu.dynamic_rotate %17 by %c15_i32 dim 1 : vector<64x256xf32>, i32 -> vector<64x256xf32>
    %38 = vector.extract_strided_slice %18 {offsets = [2, 0], sizes = [1, 256], strides = [1, 1]} : vector<9x256xf32> to vector<1x256xf32>
    %39 = vector.broadcast %38 : vector<1x256xf32> to vector<64x256xf32>
    %40 = arith.mulf %37, %39 : vector<64x256xf32>
    %41 = vector.extract_strided_slice %19 {offsets = [0, 2], sizes = [64, 1], strides = [1, 1]} : vector<64x9xf32> to vector<64x1xf32>
    %42 = vector.broadcast %41 : vector<64x1xf32> to vector<64x256xf32>
    %43 = arith.mulf %40, %42 : vector<64x256xf32>
    %44 = arith.addf %36, %43 : vector<64x256xf32>
    %c1_i32 = arith.constant 1 : i32
    %45 = tpu.dynamic_rotate %17 by %c1_i32 dim 1 : vector<64x256xf32>, i32 -> vector<64x256xf32>
    %46 = vector.extract_strided_slice %18 {offsets = [3, 0], sizes = [1, 256], strides = [1, 1]} : vector<9x256xf32> to vector<1x256xf32>
    %47 = vector.broadcast %46 : vector<1x256xf32> to vector<64x256xf32>
    %48 = arith.mulf %45, %47 : vector<64x256xf32>
    %49 = vector.extract_strided_slice %19 {offsets = [0, 3], sizes = [64, 1], strides = [1, 1]} : vector<64x9xf32> to vector<64x1xf32>
    %50 = vector.broadcast %49 : vector<64x1xf32> to vector<64x256xf32>
    %51 = arith.mulf %48, %50 : vector<64x256xf32>
    %52 = arith.addf %44, %51 : vector<64x256xf32>
    %53 = vector.extract_strided_slice %19 {offsets = [0, 4], sizes = [64, 1], strides = [1, 1]} : vector<64x9xf32> to vector<64x1xf32>
    %54 = vector.broadcast %53 : vector<64x1xf32> to vector<64x256xf32>
    %55 = arith.mulf %17, %54 : vector<64x256xf32>
    %56 = arith.addf %52, %55 : vector<64x256xf32>
    %c255_i32 = arith.constant 255 : i32
    %57 = tpu.dynamic_rotate %17 by %c255_i32 dim 1 : vector<64x256xf32>, i32 -> vector<64x256xf32>
    %58 = vector.extract_strided_slice %18 {offsets = [5, 0], sizes = [1, 256], strides = [1, 1]} : vector<9x256xf32> to vector<1x256xf32>
    %59 = vector.broadcast %58 : vector<1x256xf32> to vector<64x256xf32>
    %60 = arith.mulf %57, %59 : vector<64x256xf32>
    %61 = vector.extract_strided_slice %19 {offsets = [0, 5], sizes = [64, 1], strides = [1, 1]} : vector<64x9xf32> to vector<64x1xf32>
    %62 = vector.broadcast %61 : vector<64x1xf32> to vector<64x256xf32>
    %63 = arith.mulf %60, %62 : vector<64x256xf32>
    %64 = arith.addf %56, %63 : vector<64x256xf32>
    %c241_i32 = arith.constant 241 : i32
    %65 = tpu.dynamic_rotate %17 by %c241_i32 dim 1 : vector<64x256xf32>, i32 -> vector<64x256xf32>
    %66 = vector.extract_strided_slice %18 {offsets = [6, 0], sizes = [1, 256], strides = [1, 1]} : vector<9x256xf32> to vector<1x256xf32>
    %67 = vector.broadcast %66 : vector<1x256xf32> to vector<64x256xf32>
    %68 = arith.mulf %65, %67 : vector<64x256xf32>
    %69 = vector.extract_strided_slice %19 {offsets = [0, 6], sizes = [64, 1], strides = [1, 1]} : vector<64x9xf32> to vector<64x1xf32>
    %70 = vector.broadcast %69 : vector<64x1xf32> to vector<64x256xf32>
    %71 = arith.mulf %68, %70 : vector<64x256xf32>
    %72 = arith.addf %64, %71 : vector<64x256xf32>
    %c240_i32 = arith.constant 240 : i32
    %73 = tpu.dynamic_rotate %17 by %c240_i32 dim 1 : vector<64x256xf32>, i32 -> vector<64x256xf32>
    %74 = vector.extract_strided_slice %18 {offsets = [7, 0], sizes = [1, 256], strides = [1, 1]} : vector<9x256xf32> to vector<1x256xf32>
    %75 = vector.broadcast %74 : vector<1x256xf32> to vector<64x256xf32>
    %76 = arith.mulf %73, %75 : vector<64x256xf32>
    %77 = vector.extract_strided_slice %19 {offsets = [0, 7], sizes = [64, 1], strides = [1, 1]} : vector<64x9xf32> to vector<64x1xf32>
    %78 = vector.broadcast %77 : vector<64x1xf32> to vector<64x256xf32>
    %79 = arith.mulf %76, %78 : vector<64x256xf32>
    %80 = arith.addf %72, %79 : vector<64x256xf32>
    %c239_i32 = arith.constant 239 : i32
    %81 = tpu.dynamic_rotate %17 by %c239_i32 dim 1 : vector<64x256xf32>, i32 -> vector<64x256xf32>
    %82 = vector.extract_strided_slice %18 {offsets = [8, 0], sizes = [1, 256], strides = [1, 1]} : vector<9x256xf32> to vector<1x256xf32>
    %83 = vector.broadcast %82 : vector<1x256xf32> to vector<64x256xf32>
    %84 = arith.mulf %81, %83 : vector<64x256xf32>
    %85 = vector.extract_strided_slice %19 {offsets = [0, 8], sizes = [64, 1], strides = [1, 1]} : vector<64x9xf32> to vector<64x1xf32>
    %86 = vector.broadcast %85 : vector<64x1xf32> to vector<64x256xf32>
    %87 = arith.mulf %84, %86 : vector<64x256xf32>
    %88 = arith.addf %80, %87 : vector<64x256xf32>
    %c0_15 = arith.constant 0 : index
    %c0_16 = arith.constant 0 : index
    %89 = vector.load %arg6[%c0_15, %c0_16] : memref<64x1xf32, #tpu.memory_space<vmem>>, vector<64x1xf32>
    %90 = vector.broadcast %89 : vector<64x1xf32> to vector<64x256xf32>
    %91 = arith.addf %88, %90 : vector<64x256xf32>
    %cst_17 = arith.constant 3.000000e+00 : f32
    %92 = vector.broadcast %cst_17 : f32 to vector<64x256xf32>
    %93 = arith.addf %91, %92 : vector<64x256xf32>
    %cst_18 = arith.constant 0.000000e+00 : f32
    %cst_19 = arith.constant 6.000000e+00 : f32
    %94 = vector.broadcast %cst_18 : f32 to vector<64x256xf32>
    %95 = arith.maximumf %94, %93 : vector<64x256xf32>
    %96 = vector.broadcast %cst_19 : f32 to vector<64x256xf32>
    %97 = arith.minimumf %96, %95 : vector<64x256xf32>
    %98 = arith.mulf %91, %97 : vector<64x256xf32>
    %cst_20 = arith.constant 0.166666672 : f32
    %99 = vector.broadcast %cst_20 : f32 to vector<64x256xf32>
    %100 = arith.mulf %98, %99 : vector<64x256xf32>
    %cst_21 = arith.constant dense<0.000000e+00> : vector<64xf32>
    %101 = vector.multi_reduction <add>, %100, %cst_21 [1] : vector<64x256xf32> to vector<64xf32>
    %102 = vector.shape_cast %101 : vector<64xf32> to vector<64x1xf32>
    %cst_22 = arith.constant 3.906250e-03 : f32
    %103 = vector.broadcast %cst_22 : f32 to vector<64x1xf32>
    %104 = arith.mulf %102, %103 : vector<64x1xf32>
    %c0_23 = arith.constant 0 : index
    %c0_24 = arith.constant 0 : index
    %105 = vector.load %arg7[%c0_23, %c0_24] : memref<64x16xf32, #tpu.memory_space<vmem>>, vector<64x16xf32>
    %106 = vector.broadcast %104 : vector<64x1xf32> to vector<64x16xf32>
    %107 = arith.mulf %105, %106 : vector<64x16xf32>
    %cst_25 = arith.constant dense<0.000000e+00> : vector<16xf32>
    %108 = vector.multi_reduction <add>, %107, %cst_25 [0] : vector<64x16xf32> to vector<16xf32>
    %109 = vector.shape_cast %108 : vector<16xf32> to vector<1x16xf32>
    %c0_26 = arith.constant 0 : index
    %c0_27 = arith.constant 0 : index
    %110 = vector.load %arg8[%c0_26, %c0_27] : memref<1x16xf32, #tpu.memory_space<vmem>>, vector<1x16xf32>
    %111 = arith.addf %109, %110 : vector<1x16xf32>
    %cst_28 = arith.constant 0.000000e+00 : f32
    %112 = vector.broadcast %cst_28 : f32 to vector<1x16xf32>
    %113 = arith.maximumf %111, %112 : vector<1x16xf32>
    %c0_29 = arith.constant 0 : index
    %c0_30 = arith.constant 0 : index
    %114 = vector.load %arg9[%c0_29, %c0_30] : memref<64x16xf32, #tpu.memory_space<vmem>>, vector<64x16xf32>
    %115 = vector.broadcast %113 : vector<1x16xf32> to vector<64x16xf32>
    %116 = arith.mulf %114, %115 : vector<64x16xf32>
    %cst_31 = arith.constant dense<0.000000e+00> : vector<64xf32>
    %117 = vector.multi_reduction <add>, %116, %cst_31 [1] : vector<64x16xf32> to vector<64xf32>
    %118 = vector.shape_cast %117 : vector<64xf32> to vector<64x1xf32>
    %c0_32 = arith.constant 0 : index
    %c0_33 = arith.constant 0 : index
    %119 = vector.load %arg10[%c0_32, %c0_33] : memref<64x1xf32, #tpu.memory_space<vmem>>, vector<64x1xf32>
    %120 = arith.addf %118, %119 : vector<64x1xf32>
    %cst_34 = arith.constant 3.000000e+00 : f32
    %121 = vector.broadcast %cst_34 : f32 to vector<64x1xf32>
    %122 = arith.addf %120, %121 : vector<64x1xf32>
    %cst_35 = arith.constant 0.000000e+00 : f32
    %cst_36 = arith.constant 6.000000e+00 : f32
    %123 = vector.broadcast %cst_35 : f32 to vector<64x1xf32>
    %124 = arith.maximumf %123, %122 : vector<64x1xf32>
    %125 = vector.broadcast %cst_36 : f32 to vector<64x1xf32>
    %126 = arith.minimumf %125, %124 : vector<64x1xf32>
    %cst_37 = arith.constant 0.166666672 : f32
    %127 = vector.broadcast %cst_37 : f32 to vector<64x1xf32>
    %128 = arith.mulf %126, %127 : vector<64x1xf32>
    %129 = vector.broadcast %128 : vector<64x1xf32> to vector<64x256xf32>
    %130 = arith.mulf %100, %129 : vector<64x256xf32>
    %c0_38 = arith.constant 0 : index
    %c0_39 = arith.constant 0 : index
    %131 = vector.load %arg11[%c0_38, %c0_39] : memref<16x64xf32, #tpu.memory_space<vmem>>, vector<16x64xf32>
    %132 = arith.truncf %131 : vector<16x64xf32> to vector<16x64xbf16>
    %133 = arith.truncf %130 : vector<64x256xf32> to vector<64x256xbf16>
    %cst_40 = arith.constant dense<0.000000e+00> : vector<16x256xf32>
    %134 = tpu.matmul %132, %133, %cst_40 {dimension_numbers = #tpu.dot_dimension_numbers<[1], [0], [0], [1], [0, 0, 1, 1], [], []>} : vector<16x64xbf16>, vector<64x256xbf16>, vector<16x256xf32> -> vector<16x256xf32>
    %c0_41 = arith.constant 0 : index
    %c0_42 = arith.constant 0 : index
    %135 = vector.load %arg12[%c0_41, %c0_42] : memref<16x1xf32, #tpu.memory_space<vmem>>, vector<16x1xf32>
    %136 = vector.broadcast %135 : vector<16x1xf32> to vector<16x256xf32>
    %137 = arith.addf %134, %136 : vector<16x256xf32>
    %138 = arith.addf %137, %1 : vector<16x256xf32>
    %c0_43 = arith.constant 0 : index
    %c0_44 = arith.constant 0 : index
    %c0_45 = arith.constant 0 : index
    %139 = vector.load %arg13[%c0_43, %c0_44, %c0_45] : memref<1x16x256xf32, #tpu.memory_space<vmem>>, vector<1x16x256xf32>
    %140 = vector.shape_cast %139 : vector<1x16x256xf32> to vector<16x256xf32>
    %141 = vector.shape_cast %138 : vector<16x256xf32> to vector<1x16x256xf32>
    tpu.vector_store %arg13[%c0_43, %c0_44, %c0_45], %141 {strides = array<i32>} : memref<1x16x256xf32, #tpu.memory_space<vmem>>, vector<1x16x256xf32>,
    return
  }
  func.func @transform_0(%arg0: i32) -> (i32, i32, i32) {
    %c0_i32 = arith.constant 0 : i32
    %c0_i32_0 = arith.constant 0 : i32
    %c0_i32_1 = arith.constant 0 : i32
    return %arg0, %c0_i32, %c0_i32_0 : i32, i32, i32
  }
  func.func @transform_1(%arg0: i32) -> (i32, i32) {
    %c0_i32 = arith.constant 0 : i32
    %c0_i32_0 = arith.constant 0 : i32
    %c0_i32_1 = arith.constant 0 : i32
    return %c0_i32, %c0_i32_0 : i32, i32
  }
  func.func @transform_2(%arg0: i32) -> (i32, i32) {
    %c0_i32 = arith.constant 0 : i32
    %c0_i32_0 = arith.constant 0 : i32
    %c0_i32_1 = arith.constant 0 : i32
    return %c0_i32, %c0_i32_0 : i32, i32
  }
  func.func @transform_3(%arg0: i32) -> (i32, i32) {
    %c0_i32 = arith.constant 0 : i32
    %c0_i32_0 = arith.constant 0 : i32
    %c0_i32_1 = arith.constant 0 : i32
    return %c0_i32, %c0_i32_0 : i32, i32
  }
  func.func @transform_4(%arg0: i32) -> (i32, i32) {
    %c0_i32 = arith.constant 0 : i32
    %c0_i32_0 = arith.constant 0 : i32
    %c0_i32_1 = arith.constant 0 : i32
    return %c0_i32, %c0_i32_0 : i32, i32
  }
  func.func @transform_5(%arg0: i32) -> (i32, i32) {
    %c0_i32 = arith.constant 0 : i32
    %c0_i32_0 = arith.constant 0 : i32
    %c0_i32_1 = arith.constant 0 : i32
    return %c0_i32, %c0_i32_0 : i32, i32
  }
  func.func @transform_6(%arg0: i32) -> (i32, i32) {
    %c0_i32 = arith.constant 0 : i32
    %c0_i32_0 = arith.constant 0 : i32
    %c0_i32_1 = arith.constant 0 : i32
    return %c0_i32, %c0_i32_0 : i32, i32
  }
  func.func @transform_7(%arg0: i32) -> (i32, i32) {
    %c0_i32 = arith.constant 0 : i32
    %c0_i32_0 = arith.constant 0 : i32
    %c0_i32_1 = arith.constant 0 : i32
    return %c0_i32, %c0_i32_0 : i32, i32
  }
  func.func @transform_8(%arg0: i32) -> (i32, i32) {
    %c0_i32 = arith.constant 0 : i32
    %c0_i32_0 = arith.constant 0 : i32
    %c0_i32_1 = arith.constant 0 : i32
    return %c0_i32, %c0_i32_0 : i32, i32
  }
  func.func @transform_9(%arg0: i32) -> (i32, i32) {
    %c0_i32 = arith.constant 0 : i32
    %c0_i32_0 = arith.constant 0 : i32
    %c0_i32_1 = arith.constant 0 : i32
    return %c0_i32, %c0_i32_0 : i32, i32
  }
  func.func @transform_10(%arg0: i32) -> (i32, i32) {
    %c0_i32 = arith.constant 0 : i32
    %c0_i32_0 = arith.constant 0 : i32
    %c0_i32_1 = arith.constant 0 : i32
    return %c0_i32, %c0_i32_0 : i32, i32
  }
  func.func @transform_11(%arg0: i32) -> (i32, i32) {
    %c0_i32 = arith.constant 0 : i32
    %c0_i32_0 = arith.constant 0 : i32
    %c0_i32_1 = arith.constant 0 : i32
    return %c0_i32, %c0_i32_0 : i32, i32
  }
  func.func @transform_12(%arg0: i32) -> (i32, i32, i32) {
    %c0_i32 = arith.constant 0 : i32
    %c0_i32_0 = arith.constant 0 : i32
    %c0_i32_1 = arith.constant 0 : i32
    return %arg0, %c0_i32, %c0_i32_0 : i32, i32, i32
  }
}

</mosaic_0001>

<llo_original>
// kernel: inverted_residual_forward.1
$region0: #{inverted_residual_forward.1}
  #allocation0 [shape = 'u32[]', space=smem, size = 0x4, offset = 0x4, fixed_abs, tag = 'smem constant byte address 0x4 - core index']
  #allocation1 [shape = 'u32[144,128]{1,0:T(1,128)}', space=vmem, size = 0x12000, scoped, tag = 'internal scratch']
  %s0 = inlined_call_operand.vmem [shape: f32[2,16,256], index: 0, kind: input, shape index: {}]
  %s1 = inlined_call_operand.vmem [shape: f32[9,256], index: 1, kind: input, shape index: {}]
  %s2 = inlined_call_operand.vmem [shape: f32[64,16], index: 2, kind: input, shape index: {}]
  %s3 = inlined_call_operand.vmem [shape: f32[64,1], index: 3, kind: input, shape index: {}]
  %s4 = inlined_call_operand.vmem [shape: f32[64,9], index: 4, kind: input, shape index: {}]
  %s5 = inlined_call_operand.vmem [shape: f32[64,1], index: 5, kind: input, shape index: {}]
  %s6 = inlined_call_operand.vmem [shape: f32[64,16], index: 6, kind: input, shape index: {}]
  %s7 = inlined_call_operand.vmem [shape: f32[1,16], index: 7, kind: input, shape index: {}]
  %s8 = inlined_call_operand.vmem [shape: f32[64,16], index: 8, kind: input, shape index: {}]
  %s9 = inlined_call_operand.vmem [shape: f32[64,1], index: 9, kind: input, shape index: {}]
  %s10 = inlined_call_operand.vmem [shape: f32[16,64], index: 10, kind: input, shape index: {}]
  %s11 = inlined_call_operand.vmem [shape: f32[16,1], index: 11, kind: input, shape index: {}]
  %s12 = inlined_call_operand.vmem [shape: f32[2,16,256], index: 12, kind: output, shape index: {}]
  %s13 = sld [smem:[#allocation0]]
  $region81: #{inverted_residual_forward.1} parent=0
    _
  %s15 = ssub.s32 1, %s13
  %s16 = scalar_select 0, %s15, %s13
  loop: start=0, step=1, limit=4
  $region2: #{inverted_residual_forward.1} parent=0 // loop_pre_header
    _
  $region3: #{inverted_residual_forward.1} parent=0 // loop_header
    %s18 = sphi 0, %s22
    %p19 = scmp.ge.s32.totalorder %s18, 4
    %s28 = sphi 0, %s30
    %s31 = sphi 0, %s28
    %s32 = sphi 0, %s31
    %s48 = sphi 0, %s32
    %s52 = sphi 0, %s52
    %s54 = sphi 0, %s52
    %s55 = sphi 0, %s54
    %s69 = sphi 0, %s55
    %s73 = sphi 0, %s73
    %s75 = sphi 0, %s73
    %s76 = sphi 0, %s75
    %s90 = sphi 0, %s76
    %s94 = sphi 0, %s94
    %s96 = sphi 0, %s94
    %s97 = sphi 0, %s96
    %s111 = sphi 0, %s97
    %s115 = sphi 0, %s115
    %s117 = sphi 0, %s115
    %s118 = sphi 0, %s117
    %s132 = sphi 0, %s118
    %s136 = sphi 0, %s136
    %s138 = sphi 0, %s136
    %s139 = sphi 0, %s138
    %s153 = sphi 0, %s139
    %s157 = sphi 0, %s157
    %s159 = sphi 0, %s157
    %s160 = sphi 0, %s159
    %s174 = sphi 0, %s160
    %s178 = sphi 0, %s178
    %s180 = sphi 0, %s178
    %s181 = sphi 0, %s180
    %s195 = sphi 0, %s181
    %s199 = sphi 0, %s199
    %s201 = sphi 0, %s199
    %s202 = sphi 0, %s201
    %s216 = sphi 0, %s202
    %s220 = sphi 0, %s220
    %s222 = sphi 0, %s220
    %s223 = sphi 0, %s222
    %s237 = sphi 0, %s223
    %s241 = sphi 0, %s241
    %s243 = sphi 0, %s241
    %s244 = sphi 0, %s243
    %s258 = sphi 0, %s244
    %s262 = sphi 0, %s262
    %s264 = sphi 0, %s262
    %s265 = sphi 0, %s264
    %s279 = sphi 0, %s265
    %s285 = sphi 0, %s287
    %s288 = sphi 0, %s285
    %s289 = sphi 0, %s288
    %s305 = sphi 0, %s289
  $region4: #{inverted_residual_forward.1} parent=0 // loop_header_branch
    %21 = sbr.rel (%p19) target = $region8
  $region5: #{inverted_residual_forward.1} parent=0 // loop_body
    %s23 = ssub.s32 %s18, 1
    %s24 = ssub.s32 %s18, 2
    %s25 = sadd.s32 %s18, 1
    %s26 = ssub.s32 %s18, %s25
    %p27 = scmp.eq.s32.totalorder %s26, 0
    %s29 = sadd.s32 %s28, 1
    %s30 = scalar_select %p27, %s28, %s29
    %p33 = pneg %p27
    %p34 = scmp.eq.s32.totalorder %s18, 1
    %p35 = por %p33, %p34
    %p36 = scmp.ne.s32.totalorder %s28, %s31
    %p37 = scmp.eq.s32.totalorder %s18, 0
    %p38 = por %p36, %p37
    %p39 = scmp.ne.s32.totalorder %s28, %s31
    %p40 = scmp.eq.s32.totalorder %s23, 1
    %p41 = por %p39, %p40
    %p42 = scmp.ne.s32.totalorder %s31, %s32
    %p43 = scmp.eq.s32.totalorder %s23, 0
    %p44 = por %p42, %p43
    %p45 = scmp.ne.s32.totalorder %s31, %s32
    %p46 = scmp.eq.s32.totalorder %s24, 1
    %p47 = por %p45, %p46
    %p49 = scmp.ne.s32.totalorder %s32, %s48
    %p50 = scmp.eq.s32.totalorder %s24, 0
    %p51 = por %p49, %p50
    %s53 = sadd.s32 %s52, 1
    %p56 = scmp.eq.s32.totalorder %s18, 1
    %p57 = scmp.ne.s32.totalorder %s52, %s54
    %p58 = scmp.eq.s32.totalorder %s18, 0
    %p59 = por %p57, %p58
    %p60 = scmp.ne.s32.totalorder %s52, %s54
    %p61 = scmp.eq.s32.totalorder %s23, 1
    %p62 = por %p60, %p61
    %p63 = scmp.ne.s32.totalorder %s54, %s55
    %p64 = scmp.eq.s32.totalorder %s23, 0
    %p65 = por %p63, %p64
    %p66 = scmp.ne.s32.totalorder %s54, %s55
    %p67 = scmp.eq.s32.totalorder %s24, 1
    %p68 = por %p66, %p67
    %p70 = scmp.ne.s32.totalorder %s55, %s69
    %p71 = scmp.eq.s32.totalorder %s24, 0
    %p72 = por %p70, %p71
    %s74 = sadd.s32 %s73, 1
    %p77 = scmp.eq.s32.totalorder %s18, 1
    %p78 = scmp.ne.s32.totalorder %s73, %s75
    %p79 = scmp.eq.s32.totalorder %s18, 0
    %p80 = por %p78, %p79
    %p81 = scmp.ne.s32.totalorder %s73, %s75
    %p82 = scmp.eq.s32.totalorder %s23, 1
    %p83 = por %p81, %p82
    %p84 = scmp.ne.s32.totalorder %s75, %s76
    %p85 = scmp.eq.s32.totalorder %s23, 0
    %p86 = por %p84, %p85
    %p87 = scmp.ne.s32.totalorder %s75, %s76
    %p88 = scmp.eq.s32.totalorder %s24, 1
    %p89 = por %p87, %p88
    %p91 = scmp.ne.s32.totalorder %s76, %s90
    %p92 = scmp.eq.s32.totalorder %s24, 0
    %p93 = por %p91, %p92
    %s95 = sadd.s32 %s94, 1
    %p98 = scmp.eq.s32.totalorder %s18, 1
    %p99 = scmp.ne.s32.totalorder %s94, %s96
    %p100 = scmp.eq.s32.totalorder %s18, 0
    %p101 = por %p99, %p100
    %p102 = scmp.ne.s32.totalorder %s94, %s96
    %p103 = scmp.eq.s32.totalorder %s23, 1
    %p104 = por %p102, %p103
    %p105 = scmp.ne.s32.totalorder %s96, %s97
    %p106 = scmp.eq.s32.totalorder %s23, 0
    %p107 = por %p105, %p106
    %p108 = scmp.ne.s32.totalorder %s96, %s97
    %p109 = scmp.eq.s32.totalorder %s24, 1
    %p110 = por %p108, %p109
    %p112 = scmp.ne.s32.totalorder %s97, %s111
    %p113 = scmp.eq.s32.totalorder %s24, 0
    %p114 = por %p112, %p113
    %s116 = sadd.s32 %s115, 1
    %p119 = scmp.eq.s32.totalorder %s18, 1
    %p120 = scmp.ne.s32.totalorder %s115, %s117
    %p121 = scmp.eq.s32.totalorder %s18, 0
    %p122 = por %p120, %p121
    %p123 = scmp.ne.s32.totalorder %s115, %s117
    %p124 = scmp.eq.s32.totalorder %s23, 1
    %p125 = por %p123, %p124
    %p126 = scmp.ne.s32.totalorder %s117, %s118
    %p127 = scmp.eq.s32.totalorder %s23, 0
    %p128 = por %p126, %p127
    %p129 = scmp.ne.s32.totalorder %s117, %s118
    %p130 = scmp.eq.s32.totalorder %s24, 1
    %p131 = por %p129, %p130
    %p133 = scmp.ne.s32.totalorder %s118, %s132
    %p134 = scmp.eq.s32.totalorder %s24, 0
    %p135 = por %p133, %p134
    %s137 = sadd.s32 %s136, 1
    %p140 = scmp.eq.s32.totalorder %s18, 1
    %p141 = scmp.ne.s32.totalorder %s136, %s138
    %p142 = scmp.eq.s32.totalorder %s18, 0
    %p143 = por %p141, %p142
    %p144 = scmp.ne.s32.totalorder %s136, %s138
    %p145 = scmp.eq.s32.totalorder %s23, 1
    %p146 = por %p144, %p145
    %p147 = scmp.ne.s32.totalorder %s138, %s139
    %p148 = scmp.eq.s32.totalorder %s23, 0
    %p149 = por %p147, %p148
    %p150 = scmp.ne.s32.totalorder %s138, %s139
    %p151 = scmp.eq.s32.totalorder %s24, 1
    %p152 = por %p150, %p151
    %p154 = scmp.ne.s32.totalorder %s139, %s153
    %p155 = scmp.eq.s32.totalorder %s24, 0
    %p156 = por %p154, %p155
    %s158 = sadd.s32 %s157, 1
    %p161 = scmp.eq.s32.totalorder %s18, 1
    %p162 = scmp.ne.s32.totalorder %s157, %s159
    %p163 = scmp.eq.s32.totalorder %s18, 0
    %p164 = por %p162, %p163
    %p165 = scmp.ne.s32.totalorder %s157, %s159
    %p166 = scmp.eq.s32.totalorder %s23, 1
    %p167 = por %p165, %p166
    %p168 = scmp.ne.s32.totalorder %s159, %s160
    %p169 = scmp.eq.s32.totalorder %s23, 0
    %p170 = por %p168, %p169
    %p171 = scmp.ne.s32.totalorder %s159, %s160
    %p172 = scmp.eq.s32.totalorder %s24, 1
    %p173 = por %p171, %p172
    %p175 = scmp.ne.s32.totalorder %s160, %s174
    %p176 = scmp.eq.s32.totalorder %s24, 0
    %p177 = por %p175, %p176
    %s179 = sadd.s32 %s178, 1
    %p182 = scmp.eq.s32.totalorder %s18, 1
    %p183 = scmp.ne.s32.totalorder %s178, %s180
    %p184 = scmp.eq.s32.totalorder %s18, 0
    %p185 = por %p183, %p184
    %p186 = scmp.ne.s32.totalorder %s178, %s180
    %p187 = scmp.eq.s32.totalorder %s23, 1
    %p188 = por %p186, %p187
    %p189 = scmp.ne.s32.totalorder %s180, %s181
    %p190 = scmp.eq.s32.totalorder %s23, 0
    %p191 = por %p189, %p190
    %p192 = scmp.ne.s32.totalorder %s180, %s181
    %p193 = scmp.eq.s32.totalorder %s24, 1
    %p194 = por %p192, %p193
    %p196 = scmp.ne.s32.totalorder %s181, %s195
    %p197 = scmp.eq.s32.totalorder %s24, 0
    %p198 = por %p196, %p197
    %s200 = sadd.s32 %s199, 1
    %p203 = scmp.eq.s32.totalorder %s18, 1
    %p204 = scmp.ne.s32.totalorder %s199, %s201
    %p205 = scmp.eq.s32.totalorder %s18, 0
    %p206 = por %p204, %p205
    %p207 = scmp.ne.s32.totalorder %s199, %s201
    %p208 = scmp.eq.s32.totalorder %s23, 1
    %p209 = por %p207, %p208
    %p210 = scmp.ne.s32.totalorder %s201, %s202
    %p211 = scmp.eq.s32.totalorder %s23, 0
    %p212 = por %p210, %p211
    %p213 = scmp.ne.s32.totalorder %s201, %s202
    %p214 = scmp.eq.s32.totalorder %s24, 1
    %p215 = por %p213, %p214
    %p217 = scmp.ne.s32.totalorder %s202, %s216
    %p218 = scmp.eq.s32.totalorder %s24, 0
    %p219 = por %p217, %p218
    %s221 = sadd.s32 %s220, 1
    %p224 = scmp.eq.s32.totalorder %s18, 1
    %p225 = scmp.ne.s32.totalorder %s220, %s222
    %p226 = scmp.eq.s32.totalorder %s18, 0
    %p227 = por %p225, %p226
    %p228 = scmp.ne.s32.totalorder %s220, %s222
    %p229 = scmp.eq.s32.totalorder %s23, 1
    %p230 = por %p228, %p229
    %p231 = scmp.ne.s32.totalorder %s222, %s223
    %p232 = scmp.eq.s32.totalorder %s23, 0
    %p233 = por %p231, %p232
    %p234 = scmp.ne.s32.totalorder %s222, %s223
    %p235 = scmp.eq.s32.totalorder %s24, 1
    %p236 = por %p234, %p235
    %p238 = scmp.ne.s32.totalorder %s223, %s237
    %p239 = scmp.eq.s32.totalorder %s24, 0
    %p240 = por %p238, %p239
    %s242 = sadd.s32 %s241, 1
    %p245 = scmp.eq.s32.totalorder %s18, 1
    %p246 = scmp.ne.s32.totalorder %s241, %s243
    %p247 = scmp.eq.s32.totalorder %s18, 0
    %p248 = por %p246, %p247
    %p249 = scmp.ne.s32.totalorder %s241, %s243
    %p250 = scmp.eq.s32.totalorder %s23, 1
    %p251 = por %p249, %p250
    %p252 = scmp.ne.s32.totalorder %s243, %s244
    %p253 = scmp.eq.s32.totalorder %s23, 0
    %p254 = por %p252, %p253
    %p255 = scmp.ne.s32.totalorder %s243, %s244
    %p256 = scmp.eq.s32.totalorder %s24, 1
    %p257 = por %p255, %p256
    %p259 = scmp.ne.s32.totalorder %s244, %s258
    %p260 = scmp.eq.s32.totalorder %s24, 0
    %p261 = por %p259, %p260
    %s263 = sadd.s32 %s262, 1
    %p266 = scmp.eq.s32.totalorder %s18, 1
    %p267 = scmp.ne.s32.totalorder %s262, %s264
    %p268 = scmp.eq.s32.totalorder %s18, 0
    %p269 = por %p267, %p268
    %p270 = scmp.ne.s32.totalorder %s262, %s264
    %p271 = scmp.eq.s32.totalorder %s23, 1
    %p272 = por %p270, %p271
    %p273 = scmp.ne.s32.totalorder %s264, %s265
    %p274 = scmp.eq.s32.totalorder %s23, 0
    %p275 = por %p273, %p274
    %p276 = scmp.ne.s32.totalorder %s264, %s265
    %p277 = scmp.eq.s32.totalorder %s24, 1
    %p278 = por %p276, %p277
    %p280 = scmp.ne.s32.totalorder %s265, %s279
    %p281 = scmp.eq.s32.totalorder %s24, 0
    %p282 = por %p280, %p281
    %s283 = ssub.s32 %s18, %s25
    %p284 = scmp.eq.s32.totalorder %s283, 0
    %s286 = sadd.s32 %s285, 1
    %s287 = scalar_select %p284, %s285, %s286
    %p290 = pneg %p284
    %p291 = scmp.eq.s32.totalorder %s18, 1
    %p292 = por %p290, %p291
    %p293 = scmp.ne.s32.totalorder %s285, %s288
    %p294 = scmp.eq.s32.totalorder %s18, 0
    %p295 = por %p293, %p294
    %p296 = scmp.ne.s32.totalorder %s285, %s288
    %p297 = scmp.eq.s32.totalorder %s23, 1
    %p298 = por %p296, %p297
    %p299 = scmp.ne.s32.totalorder %s288, %s289
    %p300 = scmp.eq.s32.totalorder %s23, 0
    %p301 = por %p299, %p300
    %p302 = scmp.ne.s32.totalorder %s288, %s289
    %p303 = scmp.eq.s32.totalorder %s24, 1
    %p304 = por %p302, %p303
    %p306 = scmp.ne.s32.totalorder %s289, %s305
    %p307 = scmp.eq.s32.totalorder %s24, 0
    %p308 = por %p306, %p307
    %p309 = scmp.le.s32.totalorder 1, %s18
    %p310 = scmp.lt.s32.totalorder %s18, 3
    %p311 = pnand %p309, %p310
    %p312 = pneg %p311
    // Predicated region
    $region9: #{inverted_residual_forward.1} parent=5 // pred_check
      _
    $region10: #{inverted_residual_forward.1} parent=5 // pred_check_branch
      %314 = sbr.rel (%p311) target = $region12
    $region11: #{inverted_residual_forward.1} parent=5 // pred_region
      %s315 = ssub.s32 %s18, 1
      // Predicated region
      $region13: #{inverted_residual_forward.1} parent=11 // pred_check
        %p316 = pneg %p65
      $region14: #{inverted_residual_forward.1} parent=11 // pred_check_branch
        %318 = sbr.rel (%p316) target = $region16
      $region15: #{inverted_residual_forward.1} parent=11 // pred_region
        _
      $region16: #{inverted_residual_forward.1} parent=11 // pred_fallthru
        _
      // Predicated region
      $region17: #{inverted_residual_forward.1} parent=11 // pred_check
        %p319 = pneg %p86
      $region18: #{inverted_residual_forward.1} parent=11 // pred_check_branch
        %321 = sbr.rel (%p319) target = $region20
      $region19: #{inverted_residual_forward.1} parent=11 // pred_region
        _
      $region20: #{inverted_residual_forward.1} parent=11 // pred_fallthru
        _
      // Predicated region
      $region21: #{inverted_residual_forward.1} parent=11 // pred_check
        %p322 = pneg %p107
      $region22: #{inverted_residual_forward.1} parent=11 // pred_check_branch
        %324 = sbr.rel (%p322) target = $region24
      $region23: #{inverted_residual_forward.1} parent=11 // pred_region
        _
      $region24: #{inverted_residual_forward.1} parent=11 // pred_fallthru
        _
      // Predicated region
      $region25: #{inverted_residual_forward.1} parent=11 // pred_check
        %p325 = pneg %p128
      $region26: #{inverted_residual_forward.1} parent=11 // pred_check_branch
        %327 = sbr.rel (%p325) target = $region28
      $region27: #{inverted_residual_forward.1} parent=11 // pred_region
        _
      $region28: #{inverted_residual_forward.1} parent=11 // pred_fallthru
        _
      // Predicated region
      $region29: #{inverted_residual_forward.1} parent=11 // pred_check
        %p328 = pneg %p149
      $region30: #{inverted_residual_forward.1} parent=11 // pred_check_branch
        %330 = sbr.rel (%p328) target = $region32
      $region31: #{inverted_residual_forward.1} parent=11 // pred_region
        _
      $region32: #{inverted_residual_forward.1} parent=11 // pred_fallthru
        _
      // Predicated region
      $region33: #{inverted_residual_forward.1} parent=11 // pred_check
        %p331 = pneg %p170
      $region34: #{inverted_residual_forward.1} parent=11 // pred_check_branch
        %333 = sbr.rel (%p331) target = $region36
      $region35: #{inverted_residual_forward.1} parent=11 // pred_region
        _
      $region36: #{inverted_residual_forward.1} parent=11 // pred_fallthru
        _
      // Predicated region
      $region37: #{inverted_residual_forward.1} parent=11 // pred_check
        %p334 = pneg %p191
      $region38: #{inverted_residual_forward.1} parent=11 // pred_check_branch
        %336 = sbr.rel (%p334) target = $region40
      $region39: #{inverted_residual_forward.1} parent=11 // pred_region
        _
      $region40: #{inverted_residual_forward.1} parent=11 // pred_fallthru
        _
      // Predicated region
      $region41: #{inverted_residual_forward.1} parent=11 // pred_check
        %p337 = pneg %p212
      $region42: #{inverted_residual_forward.1} parent=11 // pred_check_branch
        %339 = sbr.rel (%p337) target = $region44
      $region43: #{inverted_residual_forward.1} parent=11 // pred_region
        _
      $region44: #{inverted_residual_forward.1} parent=11 // pred_fallthru
        _
      // Predicated region
      $region45: #{inverted_residual_forward.1} parent=11 // pred_check
        %p340 = pneg %p233
      $region46: #{inverted_residual_forward.1} parent=11 // pred_check_branch
        %342 = sbr.rel (%p340) target = $region48
      $region47: #{inverted_residual_forward.1} parent=11 // pred_region
        _
      $region48: #{inverted_residual_forward.1} parent=11 // pred_fallthru
        _
      // Predicated region
      $region49: #{inverted_residual_forward.1} parent=11 // pred_check
        %p343 = pneg %p254
      $region50: #{inverted_residual_forward.1} parent=11 // pred_check_branch
        %345 = sbr.rel (%p343) target = $region52
      $region51: #{inverted_residual_forward.1} parent=11 // pred_region
        _
      $region52: #{inverted_residual_forward.1} parent=11 // pred_fallthru
        _
      // Predicated region
      $region53: #{inverted_residual_forward.1} parent=11 // pred_check
        %p346 = pneg %p275
      $region54: #{inverted_residual_forward.1} parent=11 // pred_check_branch
        %348 = sbr.rel (%p346) target = $region56
      $region55: #{inverted_residual_forward.1} parent=11 // pred_region
        _
      $region56: #{inverted_residual_forward.1} parent=11 // pred_fallthru
        _
    $region12: #{inverted_residual_forward.1} parent=5 // pred_fallthru
      _
    %p349 = scmp.lt.s32.totalorder %s18, 2
    // Predicated region
    $region57: #{inverted_residual_forward.1} parent=5 // pred_check
      %p350 = pneg %p349
    $region58: #{inverted_residual_forward.1} parent=5 // pred_check_branch
      %352 = sbr.rel (%p350) target = $region60
    $region59: #{inverted_residual_forward.1} parent=5 // pred_region
      // Predicated region
      $region61: #{inverted_residual_forward.1} parent=59 // pred_check
        %p353 = pneg %p38
      $region62: #{inverted_residual_forward.1} parent=59 // pred_check_branch
        %355 = sbr.rel (%p353) target = $region64
      $region63: #{inverted_residual_forward.1} parent=59 // pred_region
        %p356 = scmp.lt.s32.totalorder %s18, 1
        %s357 = scalar_select %p356, %s18, 1
        %s358 = smul.addr %s357, 4
        %s359 = smul.addr %s358, 8
        %s360 = scalar_lea.vmem %s0, %s359
      $region64: #{inverted_residual_forward.1} parent=59 // pred_fallthru
        _
    $region60: #{inverted_residual_forward.1} parent=5 // pred_fallthru
      _
    %p361 = scmp.le.s32.totalorder 1, %s18
    %p362 = scmp.lt.s32.totalorder %s18, 3
    %p363 = pnand %p361, %p362
    %p364 = pneg %p363
    // Predicated region
    $region65: #{inverted_residual_forward.1} parent=5 // pred_check
      _
    $region66: #{inverted_residual_forward.1} parent=5 // pred_check_branch
      %366 = sbr.rel (%p363) target = $region68
    $region67: #{inverted_residual_forward.1} parent=5 // pred_region
      %s367 = ssub.s32 %s18, 1
      %p368 = scmp.lt.s32.totalorder %s23, 1
      %s369 = scalar_select %p368, %s23, 1
      %s370 = smul.addr %s369, 4
      %s371 = smul.addr %s370, 8
      %s372 = scalar_lea.vmem %s0, %s371
      %p373 = pneg %p44
      %p374 = pneg %p41
      %p375 = pneg %p65
      %p376 = pneg %p62
      %p377 = pneg %p86
      %p378 = pneg %p83
      %p379 = pneg %p107
      %p380 = pneg %p104
      %p381 = pneg %p128
      %p382 = pneg %p125
      %p383 = pneg %p149
      %p384 = pneg %p146
      %p385 = pneg %p170
      %p386 = pneg %p167
      %p387 = pneg %p191
      %p388 = pneg %p188
      %p389 = pneg %p212
      %p390 = pneg %p209
      %p391 = pneg %p233
      %p392 = pneg %p230
      %p393 = pneg %p254
      %p394 = pneg %p251
      %p395 = pneg %p275
      %p396 = pneg %p272
      %p397 = pneg %p301
      %p398 = pneg %p298
      %p399 = scmp.lt.s32.totalorder %s23, 1
      %s400 = scalar_select %p399, %s23, 1
      %s401 = smul.addr %s400, 4
      %s402 = smul.addr %s401, 8
      %s403 = scalar_lea.vmem %s12, %s402
      %p404 = scmp.lt.s32.totalorder %s23, 1
      %s405 = scalar_select %p404, %s23, 1
      %s406 = smul.addr %s405, 4
      %s407 = smul.addr %s406, 8
      %s408 = scalar_lea.vmem %s0, %s407
      %p409 = scmp.lt.s32.totalorder %s23, 1
      %s410 = scalar_select %p409, %s23, 1
      %s411 = smul.addr %s410, 4
      %s412 = smul.addr %s411, 8
      %s413 = scalar_lea.vmem %s12, %s412
      %v415 = vld [vmem:[%s408] sm:$0xff]
      %v416 = vld [vmem:[%s408 + $0x8] sm:$0xff]
      %v417 = vld [vmem:[%s408 + $0x10] sm:$0xff]
      %v418 = vld [vmem:[%s408 + $0x18] sm:$0xff]
      %v419 = vpack.c.bf16 %v417, %v415
      %v420 = vpack.c.bf16 %v418, %v416
      %v421 = vld [vmem:[%s2] sm:$0xff]
      %v422 = vld [vmem:[%s2 + $0x8] sm:$0xff]
      %v423 = vld [vmem:[%s2 + $0x10] sm:$0xff]
      %v424 = vld [vmem:[%s2 + $0x18] sm:$0xff]
      %v425 = vld [vmem:[%s2 + $0x20] sm:$0xff]
      %v426 = vld [vmem:[%s2 + $0x28] sm:$0xff]
      %v427 = vld [vmem:[%s2 + $0x30] sm:$0xff]
      %v428 = vld [vmem:[%s2 + $0x38] sm:$0xff]
      %v429 = vpack.c.bf16 %v422, %v421
      %v430 = vpack.c.bf16 %v424, %v423
      %v431 = vpack.c.bf16 %v426, %v425
      %v432 = vpack.c.bf16 %v428, %v427
      %v433 = vld [vmem:[%s3] sm:$0xff]
      %v434 = vld [vmem:[%s3 + $0x8] sm:$0xff]
      %v435 = vld [vmem:[%s3 + $0x10] sm:$0xff]
      %v436 = vld [vmem:[%s3 + $0x18] sm:$0xff]
      %v437 = vld [vmem:[%s3 + $0x20] sm:$0xff]
      %v438 = vld [vmem:[%s3 + $0x28] sm:$0xff]
      %v439 = vld [vmem:[%s3 + $0x30] sm:$0xff]
      %v440 = vld [vmem:[%s3 + $0x38] sm:$0xff]
      %442 = vset.pattern.permute.xlu0 0
      %443 = vperm.xlu0 %442, %v433
      %v444 = vpop.permute.xlu0 %443
      %447 = vset.pattern.permute.xlu0 0
      %448 = vperm.xlu0 %447, %v434
      %v449 = vpop.permute.xlu0 %448
      %452 = vset.pattern.permute.xlu0 0
      %453 = vperm.xlu0 %452, %v435
      %v454 = vpop.permute.xlu0 %453
      %457 = vset.pattern.permute.xlu0 0
      %458 = vperm.xlu0 %457, %v436
      %v459 = vpop.permute.xlu0 %458
      %462 = vset.pattern.permute.xlu0 0
      %463 = vperm.xlu0 %462, %v437
      %v464 = vpop.permute.xlu0 %463
      %467 = vset.pattern.permute.xlu0 0
      %468 = vperm.xlu0 %467, %v438
      %v469 = vpop.permute.xlu0 %468
      %472 = vset.pattern.permute.xlu0 0
      %473 = vperm.xlu0 %472, %v439
      %v474 = vpop.permute.xlu0 %473
      %477 = vset.pattern.permute.xlu0 0
      %478 = vperm.xlu0 %477, %v440
      %v479 = vpop.permute.xlu0 %478
      %vm481 = vcmask 130048
      %v483 = vsel %vm481, %v429, 0
      %v486 = vsel %vm481, %v430, 0
      %v489 = vsel %vm481, %v431, 0
      %v492 = vsel %vm481, %v432, 0
      %494 = vmatprep.subr.bf16.mxu0 %v420
      %495 = vmatpush1.bf16.msra.mxu0 %v419
      %496 = vmatprep.subr.bf16.mxu0 0
      %497 = vmatpush1.bf16.msra.mxu0 0
      %498 = vmatprep.subr.bf16.mxu0 0
      %499 = vmatpush1.bf16.msra.mxu0 0
      %500 = vmatprep.subr.bf16.mxu0 0
      %501 = vmatpush1.bf16.msra.mxu0 0
      %502 = vmatprep.subr.bf16.mxu0 0
      %503 = vmatpush1.bf16.msra.mxu0 0
      %504 = vmatprep.subr.bf16.mxu0 0
      %505 = vmatpush1.bf16.msra.mxu0 0
      %506 = vmatprep.subr.bf16.mxu0 0
      %507 = vmatpush1.bf16.msra.mxu0 0
      %508 = vmatprep.subr.bf16.mxu0 0
      %509 = vmatpush1.bf16.msra.mxu0 0
      %510 = vmatprep.subr.bf16.mxu0 0
      %511 = vmatpush1.bf16.msra.mxu0 0
      %512 = vmatprep.subr.bf16.mxu0 0
      %513 = vmatpush1.bf16.msra.mxu0 0
      %514 = vmatprep.subr.bf16.mxu0 0
      %515 = vmatpush1.bf16.msra.mxu0 0
      %516 = vmatprep.subr.bf16.mxu0 0
      %517 = vmatpush1.bf16.msra.mxu0 0
      %518 = vmatprep.subr.bf16.mxu0 0
      %519 = vmatpush1.bf16.msra.mxu0 0
      %520 = vmatprep.subr.bf16.mxu0 0
      %521 = vmatpush1.bf16.msra.mxu0 0
      %522 = vmatprep.subr.bf16.mxu0 0
      %523 = vmatpush1.bf16.msra.mxu0 0
      %524 = vmatprep.subr.bf16.mxu0 0
      %525 = vmatpush1.bf16.msra.mxu0 0
      %526 = vmatprep.mubr.bf16.mxu0 0
      %527 = vmatmul.mubr.bf16.gmra.mrb[0].mxu0 %v483
      %v528 = vpop.f32.mrb[0].mxu0
      %v529 = vadd.f32 %v444, %v528
      %v530 = vpop.f32.mrb[0].mxu0
      %v531 = vadd.f32 %v444, %v530
      %v532 = vpop.f32.mrb[0].mxu0
      %v533 = vadd.f32 %v449, %v532
      %v534 = vpop.f32.mrb[0].mxu0
      %v535 = vadd.f32 %v449, %v534
      %536 = vmatprep.mubr.bf16.mxu0 0
      %537 = vmatmul.mubr.bf16.gmra.mrb[0].mxu0 %v486
      %v538 = vpop.f32.mrb[0].mxu0
      %v539 = vadd.f32 %v454, %v538
      %v540 = vpop.f32.mrb[0].mxu0
      %v541 = vadd.f32 %v454, %v540
      %v542 = vpop.f32.mrb[0].mxu0
      %v543 = vadd.f32 %v459, %v542
      %v544 = vpop.f32.mrb[0].mxu0
      %v545 = vadd.f32 %v459, %v544
      %546 = vmatprep.mubr.bf16.mxu0 0
      %547 = vmatmul.mubr.bf16.gmra.mrb[0].mxu0 %v489
      %v548 = vpop.f32.mrb[0].mxu0
      %v549 = vadd.f32 %v464, %v548
      %v550 = vpop.f32.mrb[0].mxu0
      %v551 = vadd.f32 %v464, %v550
      %v552 = vpop.f32.mrb[0].mxu0
      %v553 = vadd.f32 %v469, %v552
      %v554 = vpop.f32.mrb[0].mxu0
      %v555 = vadd.f32 %v469, %v554
      %556 = vmatprep.mubr.bf16.mxu0 0
      %557 = vmatmul.mubr.bf16.gmra.mrb[0].mxu0 %v492
      %v558 = vpop.f32.mrb[0].mxu0
      %v559 = vadd.f32 %v474, %v558
      %v560 = vpop.f32.mrb[0].mxu0
      %v561 = vadd.f32 %v474, %v560
      %v562 = vpop.f32.mrb[0].mxu0
      %v563 = vadd.f32 %v479, %v562
      %v564 = vpop.f32.mrb[0].mxu0
      %v565 = vadd.f32 %v479, %v564
      %566 = vdwg.mxu0
      %v567 = vadd.f32 %v529, 3.0
      %v568 = vadd.f32 %v531, 3.0
      %v569 = vadd.f32 %v533, 3.0
      %v570 = vadd.f32 %v535, 3.0
      %v571 = vadd.f32 %v539, 3.0
      %v572 = vadd.f32 %v541, 3.0
      %v573 = vadd.f32 %v543, 3.0
      %v574 = vadd.f32 %v545, 3.0
      %v575 = vadd.f32 %v549, 3.0
      %v576 = vadd.f32 %v551, 3.0
      %v577 = vadd.f32 %v553, 3.0
      %v578 = vadd.f32 %v555, 3.0
      %v579 = vadd.f32 %v559, 3.0
      %v580 = vadd.f32 %v561, 3.0
      %v581 = vadd.f32 %v563, 3.0
      %v582 = vadd.f32 %v565, 3.0
      %v583 = vmax.f32 %v567, 0.0
      %v584 = vmax.f32 %v568, 0.0
      %v585 = vmax.f32 %v569, 0.0
      %v586 = vmax.f32 %v570, 0.0
      %v587 = vmax.f32 %v571, 0.0
      %v588 = vmax.f32 %v572, 0.0
      %v589 = vmax.f32 %v573, 0.0
      %v590 = vmax.f32 %v574, 0.0
      %v591 = vmax.f32 %v575, 0.0
      %v592 = vmax.f32 %v576, 0.0
      %v593 = vmax.f32 %v577, 0.0
      %v594 = vmax.f32 %v578, 0.0
      %v595 = vmax.f32 %v579, 0.0
      %v596 = vmax.f32 %v580, 0.0
      %v597 = vmax.f32 %v581, 0.0
      %v598 = vmax.f32 %v582, 0.0
      %v599 = vmin.f32 %v583, 6.0
      %v600 = vmin.f32 %v584, 6.0
      %v601 = vmin.f32 %v585, 6.0
      %v602 = vmin.f32 %v586, 6.0
      %v603 = vmin.f32 %v587, 6.0
      %v604 = vmin.f32 %v588, 6.0
      %v605 = vmin.f32 %v589, 6.0
      %v606 = vmin.f32 %v590, 6.0
      %v607 = vmin.f32 %v591, 6.0
      %v608 = vmin.f32 %v592, 6.0
      %v609 = vmin.f32 %v593, 6.0
      %v610 = vmin.f32 %v594, 6.0
      %v611 = vmin.f32 %v595, 6.0
      %v612 = vmin.f32 %v596, 6.0
      %v613 = vmin.f32 %v597, 6.0
      %v614 = vmin.f32 %v598, 6.0
      %v615 = vmul.f32 %v529, %v599
      %v616 = vmul.f32 %v531, %v600
      %v617 = vmul.f32 %v533, %v601
      %v618 = vmul.f32 %v535, %v602
      %v619 = vmul.f32 %v539, %v603
      %v620 = vmul.f32 %v541, %v604
      %v621 = vmul.f32 %v543, %v605
      %v622 = vmul.f32 %v545, %v606
      %v623 = vmul.f32 %v549, %v607
      %v624 = vmul.f32 %v551, %v608
      %v625 = vmul.f32 %v553, %v609
      %v626 = vmul.f32 %v555, %v610
      %v627 = vmul.f32 %v559, %v611
      %v628 = vmul.f32 %v561, %v612
      %v629 = vmul.f32 %v563, %v613
      %v630 = vmul.f32 %v565, %v614
      %v631 = vmul.f32 %v615, 0.16666667
      %v632 = vmul.f32 %v616, 0.16666667
      %v633 = vmul.f32 %v617, 0.16666667
      %v634 = vmul.f32 %v618, 0.16666667
      %v635 = vmul.f32 %v619, 0.16666667
      %v636 = vmul.f32 %v620, 0.16666667
      %v637 = vmul.f32 %v621, 0.16666667
      %v638 = vmul.f32 %v622, 0.16666667
      %v639 = vmul.f32 %v623, 0.16666667
      %v640 = vmul.f32 %v624, 0.16666667
      %v641 = vmul.f32 %v625, 0.16666667
      %v642 = vmul.f32 %v626, 0.16666667
      %v643 = vmul.f32 %v627, 0.16666667
      %v644 = vmul.f32 %v628, 0.16666667
      %v645 = vmul.f32 %v629, 0.16666667
      %v646 = vmul.f32 %v630, 0.16666667
      %v647 = vld [vmem:[%s1] sm:$0xff]
      %v648 = vld [vmem:[%s1 + $0x8] sm:$0xff]
      %v649 = vld [vmem:[%s1 + $0x10] sm:$0x1]
      %v650 = vld [vmem:[%s1 + $0x18] sm:$0x1]
      %v651 = vld [vmem:[%s4] sm:$0xff]
      %v652 = vld [vmem:[%s4 + $0x8] sm:$0xff]
      %v653 = vld [vmem:[%s4 + $0x10] sm:$0xff]
      %v654 = vld [vmem:[%s4 + $0x18] sm:$0xff]
      %v655 = vld [vmem:[%s4 + $0x20] sm:$0xff]
      %v656 = vld [vmem:[%s4 + $0x28] sm:$0xff]
      %v657 = vld [vmem:[%s4 + $0x30] sm:$0xff]
      %v658 = vld [vmem:[%s4 + $0x38] sm:$0xff]
      %659 = vrot.lane.b32.xlu0 %v631, 17
      %v660 = vpop.permute.xlu0 %659
      %661 = vrot.lane.b32.xlu0 %v633, 17
      %v662 = vpop.permute.xlu0 %661
      %663 = vrot.lane.b32.xlu0 %v635, 17
      %v664 = vpop.permute.xlu0 %663
      %665 = vrot.lane.b32.xlu0 %v637, 17
      %v666 = vpop.permute.xlu0 %665
      %667 = vrot.lane.b32.xlu0 %v639, 17
      %v668 = vpop.permute.xlu0 %667
      %669 = vrot.lane.b32.xlu0 %v641, 17
      %v670 = vpop.permute.xlu0 %669
      %671 = vrot.lane.b32.xlu0 %v643, 17
      %v672 = vpop.permute.xlu0 %671
      %673 = vrot.lane.b32.xlu0 %v645, 17
      %v674 = vpop.permute.xlu0 %673
      %675 = vrot.lane.b32.xlu0 %v632, 17
      %v676 = vpop.permute.xlu0 %675
      %677 = vrot.lane.b32.xlu0 %v634, 17
      %v678 = vpop.permute.xlu0 %677
      %679 = vrot.lane.b32.xlu0 %v636, 17
      %v680 = vpop.permute.xlu0 %679
      %681 = vrot.lane.b32.xlu0 %v638, 17
      %v682 = vpop.permute.xlu0 %681
      %683 = vrot.lane.b32.xlu0 %v640, 17
      %v684 = vpop.permute.xlu0 %683
      %685 = vrot.lane.b32.xlu0 %v642, 17
      %v686 = vpop.permute.xlu0 %685
      %687 = vrot.lane.b32.xlu0 %v644, 17
      %v688 = vpop.permute.xlu0 %687
      %689 = vrot.lane.b32.xlu0 %v646, 17
      %v690 = vpop.permute.xlu0 %689
      %v691 = vlaneseq
      %v692 = vand.u32 %v691, 127
      %vm693 = vcmp.lt.s32.totalorder %v692, 17
      %v694 = vsel %vm693, %v660, %v676
      %v695 = vsel %vm693, %v662, %v678
      %v696 = vsel %vm693, %v664, %v680
      %v697 = vsel %vm693, %v666, %v682
      %v698 = vsel %vm693, %v668, %v684
      %v699 = vsel %vm693, %v670, %v686
      %v700 = vsel %vm693, %v672, %v688
      %v701 = vsel %vm693, %v674, %v690
      %v702 = vsel %vm693, %v676, %v660
      %v703 = vsel %vm693, %v678, %v662
      %v704 = vsel %vm693, %v680, %v664
      %v705 = vsel %vm693, %v682, %v666
      %v706 = vsel %vm693, %v684, %v668
      %v707 = vsel %vm693, %v686, %v670
      %v708 = vsel %vm693, %v688, %v672
      %v709 = vsel %vm693, %v690, %v674
      %v710 = vlaneseq
      %v711 = vshrl.u32 %v710, 7
      %v712 = vsub.s32 0, %v711
      %v713 = vrot.slane %v647, %v712
      %v714 = vlaneseq
      %v715 = vshrl.u32 %v714, 7
      %v716 = vsub.s32 0, %v715
      %v717 = vrot.slane %v648, %v716
      %v718 = vmul.f32 %v702, %v713
      %v719 = vmul.f32 %v694, %v717
      %v720 = vmul.f32 %v703, %v713
      %v721 = vmul.f32 %v695, %v717
      %v722 = vmul.f32 %v704, %v713
      %v723 = vmul.f32 %v696, %v717
      %v724 = vmul.f32 %v705, %v713
      %v725 = vmul.f32 %v697, %v717
      %v726 = vmul.f32 %v706, %v713
      %v727 = vmul.f32 %v698, %v717
      %v728 = vmul.f32 %v707, %v713
      %v729 = vmul.f32 %v699, %v717
      %v730 = vmul.f32 %v708, %v713
      %v731 = vmul.f32 %v700, %v717
      %v732 = vmul.f32 %v709, %v713
      %v733 = vmul.f32 %v701, %v717
      %735 = vset.pattern.permute.xlu0 0
      %736 = vperm.xlu0 %735, %v651
      %v737 = vpop.permute.xlu0 %736
      %740 = vset.pattern.permute.xlu0 0
      %741 = vperm.xlu0 %740, %v652
      %v742 = vpop.permute.xlu0 %741
      %745 = vset.pattern.permute.xlu0 0
      %746 = vperm.xlu0 %745, %v653
      %v747 = vpop.permute.xlu0 %746
      %750 = vset.pattern.permute.xlu0 0
      %751 = vperm.xlu0 %750, %v654
      %v752 = vpop.permute.xlu0 %751
      %755 = vset.pattern.permute.xlu0 0
      %756 = vperm.xlu0 %755, %v655
      %v757 = vpop.permute.xlu0 %756
      %760 = vset.pattern.permute.xlu0 0
      %761 = vperm.xlu0 %760, %v656
      %v762 = vpop.permute.xlu0 %761
      %765 = vset.pattern.permute.xlu0 0
      %766 = vperm.xlu0 %765, %v657
      %v767 = vpop.permute.xlu0 %766
      %770 = vset.pattern.permute.xlu0 0
      %771 = vperm.xlu0 %770, %v658
      %v772 = vpop.permute.xlu0 %771
      %v774 = vmul.f32 %v718, %v737
      %v775 = vmul.f32 %v719, %v737
      %v776 = vmul.f32 %v720, %v742
      %v777 = vmul.f32 %v721, %v742
      %v778 = vmul.f32 %v722, %v747
      %v779 = vmul.f32 %v723, %v747
      %v780 = vmul.f32 %v724, %v752
      %v781 = vmul.f32 %v725, %v752
      %v782 = vmul.f32 %v726, %v757
      %v783 = vmul.f32 %v727, %v757
      %v784 = vmul.f32 %v728, %v762
      %v785 = vmul.f32 %v729, %v762
      %v786 = vmul.f32 %v730, %v767
      %v787 = vmul.f32 %v731, %v767
      %v788 = vmul.f32 %v732, %v772
      %v789 = vmul.f32 %v733, %v772
      %v790 = vadd.f32 %v774, 0.0
      %v791 = vadd.f32 %v775, 0.0
      %v792 = vadd.f32 %v776, 0.0
      %v793 = vadd.f32 %v777, 0.0
      %v794 = vadd.f32 %v778, 0.0
      %v795 = vadd.f32 %v779, 0.0
      %v796 = vadd.f32 %v780, 0.0
      %v797 = vadd.f32 %v781, 0.0
      %v798 = vadd.f32 %v782, 0.0
      %v799 = vadd.f32 %v783, 0.0
      %v800 = vadd.f32 %v784, 0.0
      %v801 = vadd.f32 %v785, 0.0
      %v802 = vadd.f32 %v786, 0.0
      %v803 = vadd.f32 %v787, 0.0
      %v804 = vadd.f32 %v788, 0.0
      %v805 = vadd.f32 %v789, 0.0
      %806 = vrot.lane.b32.xlu0 %v631, 16
      %v807 = vpop.permute.xlu0 %806
      %808 = vrot.lane.b32.xlu0 %v633, 16
      %v809 = vpop.permute.xlu0 %808
      %810 = vrot.lane.b32.xlu0 %v635, 16
      %v811 = vpop.permute.xlu0 %810
      %812 = vrot.lane.b32.xlu0 %v637, 16
      %v813 = vpop.permute.xlu0 %812
      %814 = vrot.lane.b32.xlu0 %v639, 16
      %v815 = vpop.permute.xlu0 %814
      %816 = vrot.lane.b32.xlu0 %v641, 16
      %v817 = vpop.permute.xlu0 %816
      %818 = vrot.lane.b32.xlu0 %v643, 16
      %v819 = vpop.permute.xlu0 %818
      %820 = vrot.lane.b32.xlu0 %v645, 16
      %v821 = vpop.permute.xlu0 %820
      %822 = vrot.lane.b32.xlu0 %v632, 16
      %v823 = vpop.permute.xlu0 %822
      %824 = vrot.lane.b32.xlu0 %v634, 16
      %v825 = vpop.permute.xlu0 %824
      %826 = vrot.lane.b32.xlu0 %v636, 16
      %v827 = vpop.permute.xlu0 %826
      %828 = vrot.lane.b32.xlu0 %v638, 16
      %v829 = vpop.permute.xlu0 %828
      %830 = vrot.lane.b32.xlu0 %v640, 16
      %v831 = vpop.permute.xlu0 %830
      %832 = vrot.lane.b32.xlu0 %v642, 16
      %v833 = vpop.permute.xlu0 %832
      %834 = vrot.lane.b32.xlu0 %v644, 16
      %v835 = vpop.permute.xlu0 %834
      %836 = vrot.lane.b32.xlu0 %v646, 16
      %v837 = vpop.permute.xlu0 %836
      %vm838 = vcmp.lt.s32.totalorder %v692, 16
      %v839 = vsel %vm838, %v807, %v823
      %v840 = vsel %vm838, %v809, %v825
      %v841 = vsel %vm838, %v811, %v827
      %v842 = vsel %vm838, %v813, %v829
      %v843 = vsel %vm838, %v815, %v831
      %v844 = vsel %vm838, %v817, %v833
      %v845 = vsel %vm838, %v819, %v835
      %v846 = vsel %vm838, %v821, %v837
      %v847 = vsel %vm838, %v823, %v807
      %v848 = vsel %vm838, %v825, %v809
      %v849 = vsel %vm838, %v827, %v811
      %v850 = vsel %vm838, %v829, %v813
      %v851 = vsel %vm838, %v831, %v815
      %v852 = vsel %vm838, %v833, %v817
      %v853 = vsel %vm838, %v835, %v819
      %v854 = vsel %vm838, %v837, %v821
      %v855 = vlaneseq
      %v856 = vshrl.u32 %v855, 7
      %v857 = vsub.s32 1, %v856
      %v858 = vrot.slane %v647, %v857
      %v859 = vlaneseq
      %v860 = vshrl.u32 %v859, 7
      %v861 = vsub.s32 1, %v860
      %v862 = vrot.slane %v648, %v861
      %v863 = vmul.f32 %v847, %v858
      %v864 = vmul.f32 %v839, %v862
      %v865 = vmul.f32 %v848, %v858
      %v866 = vmul.f32 %v840, %v862
      %v867 = vmul.f32 %v849, %v858
      %v868 = vmul.f32 %v841, %v862
      %v869 = vmul.f32 %v850, %v858
      %v870 = vmul.f32 %v842, %v862
      %v871 = vmul.f32 %v851, %v858
      %v872 = vmul.f32 %v843, %v862
      %v873 = vmul.f32 %v852, %v858
      %v874 = vmul.f32 %v844, %v862
      %v875 = vmul.f32 %v853, %v858
      %v876 = vmul.f32 %v845, %v862
      %v877 = vmul.f32 %v854, %v858
      %v878 = vmul.f32 %v846, %v862
      %879 = vset.pattern.permute.xlu0 1
      %880 = vperm.xlu0 %879, %v651
      %v881 = vpop.permute.xlu0 %880
      %883 = vset.pattern.permute.xlu0 1
      %884 = vperm.xlu0 %883, %v652
      %v885 = vpop.permute.xlu0 %884
      %887 = vset.pattern.permute.xlu0 1
      %888 = vperm.xlu0 %887, %v653
      %v889 = vpop.permute.xlu0 %888
      %891 = vset.pattern.permute.xlu0 1
      %892 = vperm.xlu0 %891, %v654
      %v893 = vpop.permute.xlu0 %892
      %895 = vset.pattern.permute.xlu0 1
      %896 = vperm.xlu0 %895, %v655
      %v897 = vpop.permute.xlu0 %896
      %899 = vset.pattern.permute.xlu0 1
      %900 = vperm.xlu0 %899, %v656
      %v901 = vpop.permute.xlu0 %900
      %903 = vset.pattern.permute.xlu0 1
      %904 = vperm.xlu0 %903, %v657
      %v905 = vpop.permute.xlu0 %904
      %907 = vset.pattern.permute.xlu0 1
      %908 = vperm.xlu0 %907, %v658
      %v909 = vpop.permute.xlu0 %908
      %v911 = vmul.f32 %v863, %v881
      %v912 = vmul.f32 %v864, %v881
      %v913 = vmul.f32 %v865, %v885
      %v914 = vmul.f32 %v866, %v885
      %v915 = vmul.f32 %v867, %v889
      %v916 = vmul.f32 %v868, %v889
      %v917 = vmul.f32 %v869, %v893
      %v918 = vmul.f32 %v870, %v893
      %v919 = vmul.f32 %v871, %v897
      %v920 = vmul.f32 %v872, %v897
      %v921 = vmul.f32 %v873, %v901
      %v922 = vmul.f32 %v874, %v901
      %v923 = vmul.f32 %v875, %v905
      %v924 = vmul.f32 %v876, %v905
      %v925 = vmul.f32 %v877, %v909
      %v926 = vmul.f32 %v878, %v909
      %v927 = vadd.f32 %v790, %v911
      %v928 = vadd.f32 %v791, %v912
      %v929 = vadd.f32 %v792, %v913
      %v930 = vadd.f32 %v793, %v914
      %v931 = vadd.f32 %v794, %v915
      %v932 = vadd.f32 %v795, %v916
      %v933 = vadd.f32 %v796, %v917
      %v934 = vadd.f32 %v797, %v918
      %v935 = vadd.f32 %v798, %v919
      %v936 = vadd.f32 %v799, %v920
      %v937 = vadd.f32 %v800, %v921
      %v938 = vadd.f32 %v801, %v922
      %v939 = vadd.f32 %v802, %v923
      %v940 = vadd.f32 %v803, %v924
      %v941 = vadd.f32 %v804, %v925
      %v942 = vadd.f32 %v805, %v926
      %943 = vrot.lane.b32.xlu0 %v631, 15
      %v944 = vpop.permute.xlu0 %943
      %945 = vrot.lane.b32.xlu0 %v633, 15
      %v946 = vpop.permute.xlu0 %945
      %947 = vrot.lane.b32.xlu0 %v635, 15
      %v948 = vpop.permute.xlu0 %947
      %949 = vrot.lane.b32.xlu0 %v637, 15
      %v950 = vpop.permute.xlu0 %949
      %951 = vrot.lane.b32.xlu0 %v639, 15
      %v952 = vpop.permute.xlu0 %951
      %953 = vrot.lane.b32.xlu0 %v641, 15
      %v954 = vpop.permute.xlu0 %953
      %955 = vrot.lane.b32.xlu0 %v643, 15
      %v956 = vpop.permute.xlu0 %955
      %957 = vrot.lane.b32.xlu0 %v645, 15
      %v958 = vpop.permute.xlu0 %957
      %959 = vrot.lane.b32.xlu0 %v632, 15
      %v960 = vpop.permute.xlu0 %959
      %961 = vrot.lane.b32.xlu0 %v634, 15
      %v962 = vpop.permute.xlu0 %961
      %963 = vrot.lane.b32.xlu0 %v636, 15
      %v964 = vpop.permute.xlu0 %963
      %965 = vrot.lane.b32.xlu0 %v638, 15
      %v966 = vpop.permute.xlu0 %965
      %967 = vrot.lane.b32.xlu0 %v640, 15
      %v968 = vpop.permute.xlu0 %967
      %969 = vrot.lane.b32.xlu0 %v642, 15
      %v970 = vpop.permute.xlu0 %969
      %971 = vrot.lane.b32.xlu0 %v644, 15
      %v972 = vpop.permute.xlu0 %971
      %973 = vrot.lane.b32.xlu0 %v646, 15
      %v974 = vpop.permute.xlu0 %973
      %vm975 = vcmp.lt.s32.totalorder %v692, 15
      %v976 = vsel %vm975, %v944, %v960
      %v977 = vsel %vm975, %v946, %v962
      %v978 = vsel %vm975, %v948, %v964
      %v979 = vsel %vm975, %v950, %v966
      %v980 = vsel %vm975, %v952, %v968
      %v981 = vsel %vm975, %v954, %v970
      %v982 = vsel %vm975, %v956, %v972
      %v983 = vsel %vm975, %v958, %v974
      %v984 = vsel %vm975, %v960, %v944
      %v985 = vsel %vm975, %v962, %v946
      %v986 = vsel %vm975, %v964, %v948
      %v987 = vsel %vm975, %v966, %v950
      %v988 = vsel %vm975, %v968, %v952
      %v989 = vsel %vm975, %v970, %v954
      %v990 = vsel %vm975, %v972, %v956
      %v991 = vsel %vm975, %v974, %v958
      %v992 = vlaneseq
      %v993 = vshrl.u32 %v992, 7
      %v994 = vsub.s32 2, %v993
      %v995 = vrot.slane %v647, %v994
      %v996 = vlaneseq
      %v997 = vshrl.u32 %v996, 7
      %v998 = vsub.s32 2, %v997
      %v999 = vrot.slane %v648, %v998
      %v1000 = vmul.f32 %v984, %v995
      %v1001 = vmul.f32 %v976, %v999
      %v1002 = vmul.f32 %v985, %v995
      %v1003 = vmul.f32 %v977, %v999
      %v1004 = vmul.f32 %v986, %v995
      %v1005 = vmul.f32 %v978, %v999
      %v1006 = vmul.f32 %v987, %v995
      %v1007 = vmul.f32 %v979, %v999
      %v1008 = vmul.f32 %v988, %v995
      %v1009 = vmul.f32 %v980, %v999
      %v1010 = vmul.f32 %v989, %v995
      %v1011 = vmul.f32 %v981, %v999
      %v1012 = vmul.f32 %v990, %v995
      %v1013 = vmul.f32 %v982, %v999
      %v1014 = vmul.f32 %v991, %v995
      %v1015 = vmul.f32 %v983, %v999
      %1016 = vset.pattern.permute.xlu0 2
      %1017 = vperm.xlu0 %1016, %v651
      %v1018 = vpop.permute.xlu0 %1017
      %1020 = vset.pattern.permute.xlu0 2
      %1021 = vperm.xlu0 %1020, %v652
      %v1022 = vpop.permute.xlu0 %1021
      %1024 = vset.pattern.permute.xlu0 2
      %1025 = vperm.xlu0 %1024, %v653
      %v1026 = vpop.permute.xlu0 %1025
      %1028 = vset.pattern.permute.xlu0 2
      %1029 = vperm.xlu0 %1028, %v654
      %v1030 = vpop.permute.xlu0 %1029
      %1032 = vset.pattern.permute.xlu0 2
      %1033 = vperm.xlu0 %1032, %v655
      %v1034 = vpop.permute.xlu0 %1033
      %1036 = vset.pattern.permute.xlu0 2
      %1037 = vperm.xlu0 %1036, %v656
      %v1038 = vpop.permute.xlu0 %1037
      %1040 = vset.pattern.permute.xlu0 2
      %1041 = vperm.xlu0 %1040, %v657
      %v1042 = vpop.permute.xlu0 %1041
      %1044 = vset.pattern.permute.xlu0 2
      %1045 = vperm.xlu0 %1044, %v658
      %v1046 = vpop.permute.xlu0 %1045
      %v1048 = vmul.f32 %v1000, %v1018
      %v1049 = vmul.f32 %v1001, %v1018
      %v1050 = vmul.f32 %v1002, %v1022
      %v1051 = vmul.f32 %v1003, %v1022
      %v1052 = vmul.f32 %v1004, %v1026
      %v1053 = vmul.f32 %v1005, %v1026
      %v1054 = vmul.f32 %v1006, %v1030
      %v1055 = vmul.f32 %v1007, %v1030
      %v1056 = vmul.f32 %v1008, %v1034
      %v1057 = vmul.f32 %v1009, %v1034
      %v1058 = vmul.f32 %v1010, %v1038
      %v1059 = vmul.f32 %v1011, %v1038
      %v1060 = vmul.f32 %v1012, %v1042
      %v1061 = vmul.f32 %v1013, %v1042
      %v1062 = vmul.f32 %v1014, %v1046
      %v1063 = vmul.f32 %v1015, %v1046
      %v1064 = vadd.f32 %v927, %v1048
      %v1065 = vadd.f32 %v928, %v1049
      %v1066 = vadd.f32 %v929, %v1050
      %v1067 = vadd.f32 %v930, %v1051
      %v1068 = vadd.f32 %v931, %v1052
      %v1069 = vadd.f32 %v932, %v1053
      %v1070 = vadd.f32 %v933, %v1054
      %v1071 = vadd.f32 %v934, %v1055
      %v1072 = vadd.f32 %v935, %v1056
      %v1073 = vadd.f32 %v936, %v1057
      %v1074 = vadd.f32 %v937, %v1058
      %v1075 = vadd.f32 %v938, %v1059
      %v1076 = vadd.f32 %v939, %v1060
      %v1077 = vadd.f32 %v940, %v1061
      %v1078 = vadd.f32 %v941, %v1062
      %v1079 = vadd.f32 %v942, %v1063
      %1080 = vrot.lane.b32.xlu0 %v631, 1
      %v1081 = vpop.permute.xlu0 %1080
      %1082 = vrot.lane.b32.xlu0 %v633, 1
      %v1083 = vpop.permute.xlu0 %1082
      %1084 = vrot.lane.b32.xlu0 %v635, 1
      %v1085 = vpop.permute.xlu0 %1084
      %1086 = vrot.lane.b32.xlu0 %v637, 1
      %v1087 = vpop.permute.xlu0 %1086
      %1088 = vrot.lane.b32.xlu0 %v639, 1
      %v1089 = vpop.permute.xlu0 %1088
      %1090 = vrot.lane.b32.xlu0 %v641, 1
      %v1091 = vpop.permute.xlu0 %1090
      %1092 = vrot.lane.b32.xlu0 %v643, 1
      %v1093 = vpop.permute.xlu0 %1092
      %1094 = vrot.lane.b32.xlu0 %v645, 1
      %v1095 = vpop.permute.xlu0 %1094
      %1096 = vrot.lane.b32.xlu0 %v632, 1
      %v1097 = vpop.permute.xlu0 %1096
      %1098 = vrot.lane.b32.xlu0 %v634, 1
      %v1099 = vpop.permute.xlu0 %1098
      %1100 = vrot.lane.b32.xlu0 %v636, 1
      %v1101 = vpop.permute.xlu0 %1100
      %1102 = vrot.lane.b32.xlu0 %v638, 1
      %v1103 = vpop.permute.xlu0 %1102
      %1104 = vrot.lane.b32.xlu0 %v640, 1
      %v1105 = vpop.permute.xlu0 %1104
      %1106 = vrot.lane.b32.xlu0 %v642, 1
      %v1107 = vpop.permute.xlu0 %1106
      %1108 = vrot.lane.b32.xlu0 %v644, 1
      %v1109 = vpop.permute.xlu0 %1108
      %1110 = vrot.lane.b32.xlu0 %v646, 1
      %v1111 = vpop.permute.xlu0 %1110
      %vm1112 = vcmp.lt.s32.totalorder %v692, 1
      %v1113 = vsel %vm1112, %v1081, %v1097
      %v1114 = vsel %vm1112, %v1083, %v1099
      %v1115 = vsel %vm1112, %v1085, %v1101
      %v1116 = vsel %vm1112, %v1087, %v1103
      %v1117 = vsel %vm1112, %v1089, %v1105
      %v1118 = vsel %vm1112, %v1091, %v1107
      %v1119 = vsel %vm1112, %v1093, %v1109
      %v1120 = vsel %vm1112, %v1095, %v1111
      %v1121 = vsel %vm1112, %v1097, %v1081
      %v1122 = vsel %vm1112, %v1099, %v1083
      %v1123 = vsel %vm1112, %v1101, %v1085
      %v1124 = vsel %vm1112, %v1103, %v1087
      %v1125 = vsel %vm1112, %v1105, %v1089
      %v1126 = vsel %vm1112, %v1107, %v1091
      %v1127 = vsel %vm1112, %v1109, %v1093
      %v1128 = vsel %vm1112, %v1111, %v1095
      %v1129 = vlaneseq
      %v1130 = vshrl.u32 %v1129, 7
      %v1131 = vsub.s32 3, %v1130
      %v1132 = vrot.slane %v647, %v1131
      %v1133 = vlaneseq
      %v1134 = vshrl.u32 %v1133, 7
      %v1135 = vsub.s32 3, %v1134
      %v1136 = vrot.slane %v648, %v1135
      %v1137 = vmul.f32 %v1121, %v1132
      %v1138 = vmul.f32 %v1113, %v1136
      %v1139 = vmul.f32 %v1122, %v1132
      %v1140 = vmul.f32 %v1114, %v1136
      %v1141 = vmul.f32 %v1123, %v1132
      %v1142 = vmul.f32 %v1115, %v1136
      %v1143 = vmul.f32 %v1124, %v1132
      %v1144 = vmul.f32 %v1116, %v1136
      %v1145 = vmul.f32 %v1125, %v1132
      %v1146 = vmul.f32 %v1117, %v1136
      %v1147 = vmul.f32 %v1126, %v1132
      %v1148 = vmul.f32 %v1118, %v1136
      %v1149 = vmul.f32 %v1127, %v1132
      %v1150 = vmul.f32 %v1119, %v1136
      %v1151 = vmul.f32 %v1128, %v1132
      %v1152 = vmul.f32 %v1120, %v1136
      %1153 = vset.pattern.permute.xlu0 3
      %1154 = vperm.xlu0 %1153, %v651
      %v1155 = vpop.permute.xlu0 %1154
      %1157 = vset.pattern.permute.xlu0 3
      %1158 = vperm.xlu0 %1157, %v652
      %v1159 = vpop.permute.xlu0 %1158
      %1161 = vset.pattern.permute.xlu0 3
      %1162 = vperm.xlu0 %1161, %v653
      %v1163 = vpop.permute.xlu0 %1162
      %1165 = vset.pattern.permute.xlu0 3
      %1166 = vperm.xlu0 %1165, %v654
      %v1167 = vpop.permute.xlu0 %1166
      %1169 = vset.pattern.permute.xlu0 3
      %1170 = vperm.xlu0 %1169, %v655
      %v1171 = vpop.permute.xlu0 %1170
      %1173 = vset.pattern.permute.xlu0 3
      %1174 = vperm.xlu0 %1173, %v656
      %v1175 = vpop.permute.xlu0 %1174
      %1177 = vset.pattern.permute.xlu0 3
      %1178 = vperm.xlu0 %1177, %v657
      %v1179 = vpop.permute.xlu0 %1178
      %1181 = vset.pattern.permute.xlu0 3
      %1182 = vperm.xlu0 %1181, %v658
      %v1183 = vpop.permute.xlu0 %1182
      %v1185 = vmul.f32 %v1137, %v1155
      %v1186 = vmul.f32 %v1138, %v1155
      %v1187 = vmul.f32 %v1139, %v1159
      %v1188 = vmul.f32 %v1140, %v1159
      %v1189 = vmul.f32 %v1141, %v1163
      %v1190 = vmul.f32 %v1142, %v1163
      %v1191 = vmul.f32 %v1143, %v1167
      %v1192 = vmul.f32 %v1144, %v1167
      %v1193 = vmul.f32 %v1145, %v1171
      %v1194 = vmul.f32 %v1146, %v1171
      %v1195 = vmul.f32 %v1147, %v1175
      %v1196 = vmul.f32 %v1148, %v1175
      %v1197 = vmul.f32 %v1149, %v1179
      %v1198 = vmul.f32 %v1150, %v1179
      %v1199 = vmul.f32 %v1151, %v1183
      %v1200 = vmul.f32 %v1152, %v1183
      %v1201 = vadd.f32 %v1064, %v1185
      %v1202 = vadd.f32 %v1065, %v1186
      %v1203 = vadd.f32 %v1066, %v1187
      %v1204 = vadd.f32 %v1067, %v1188
      %v1205 = vadd.f32 %v1068, %v1189
      %v1206 = vadd.f32 %v1069, %v1190
      %v1207 = vadd.f32 %v1070, %v1191
      %v1208 = vadd.f32 %v1071, %v1192
      %v1209 = vadd.f32 %v1072, %v1193
      %v1210 = vadd.f32 %v1073, %v1194
      %v1211 = vadd.f32 %v1074, %v1195
      %v1212 = vadd.f32 %v1075, %v1196
      %v1213 = vadd.f32 %v1076, %v1197
      %v1214 = vadd.f32 %v1077, %v1198
      %v1215 = vadd.f32 %v1078, %v1199
      %v1216 = vadd.f32 %v1079, %v1200
      %1217 = vset.pattern.permute.xlu0 4
      %1218 = vperm.xlu0 %1217, %v651
      %v1219 = vpop.permute.xlu0 %1218
      %1221 = vset.pattern.permute.xlu0 4
      %1222 = vperm.xlu0 %1221, %v652
      %v1223 = vpop.permute.xlu0 %1222
      %1225 = vset.pattern.permute.xlu0 4
      %1226 = vperm.xlu0 %1225, %v653
      %v1227 = vpop.permute.xlu0 %1226
      %1229 = vset.pattern.permute.xlu0 4
      %1230 = vperm.xlu0 %1229, %v654
      %v1231 = vpop.permute.xlu0 %1230
      %1233 = vset.pattern.permute.xlu0 4
      %1234 = vperm.xlu0 %1233, %v655
      %v1235 = vpop.permute.xlu0 %1234
      %1237 = vset.pattern.permute.xlu0 4
      %1238 = vperm.xlu0 %1237, %v656
      %v1239 = vpop.permute.xlu0 %1238
      %1241 = vset.pattern.permute.xlu0 4
      %1242 = vperm.xlu0 %1241, %v657
      %v1243 = vpop.permute.xlu0 %1242
      %1245 = vset.pattern.permute.xlu0 4
      %1246 = vperm.xlu0 %1245, %v658
      %v1247 = vpop.permute.xlu0 %1246
      %v1249 = vmul.f32 %v631, %v1219
      %v1250 = vmul.f32 %v632, %v1219
      %v1251 = vmul.f32 %v633, %v1223
      %v1252 = vmul.f32 %v634, %v1223
      %v1253 = vmul.f32 %v635, %v1227
      %v1254 = vmul.f32 %v636, %v1227
      %v1255 = vmul.f32 %v637, %v1231
      %v1256 = vmul.f32 %v638, %v1231
      %v1257 = vmul.f32 %v639, %v1235
      %v1258 = vmul.f32 %v640, %v1235
      %v1259 = vmul.f32 %v641, %v1239
      %v1260 = vmul.f32 %v642, %v1239
      %v1261 = vmul.f32 %v643, %v1243
      %v1262 = vmul.f32 %v644, %v1243
      %v1263 = vmul.f32 %v645, %v1247
      %v1264 = vmul.f32 %v646, %v1247
      %v1265 = vadd.f32 %v1201, %v1249
      %v1266 = vadd.f32 %v1202, %v1250
      %v1267 = vadd.f32 %v1203, %v1251
      %v1268 = vadd.f32 %v1204, %v1252
      %v1269 = vadd.f32 %v1205, %v1253
      %v1270 = vadd.f32 %v1206, %v1254
      %v1271 = vadd.f32 %v1207, %v1255
      %v1272 = vadd.f32 %v1208, %v1256
      %v1273 = vadd.f32 %v1209, %v1257
      %v1274 = vadd.f32 %v1210, %v1258
      %v1275 = vadd.f32 %v1211, %v1259
      %v1276 = vadd.f32 %v1212, %v1260
      %v1277 = vadd.f32 %v1213, %v1261
      %v1278 = vadd.f32 %v1214, %v1262
      %v1279 = vadd.f32 %v1215, %v1263
      %v1280 = vadd.f32 %v1216, %v1264
      %1281 = vrot.lane.b32.xlu0 %v631, 127
      %v1282 = vpop.permute.xlu0 %1281
      %1283 = vrot.lane.b32.xlu0 %v633, 127
      %v1284 = vpop.permute.xlu0 %1283
      %1285 = vrot.lane.b32.xlu0 %v635, 127
      %v1286 = vpop.permute.xlu0 %1285
      %1287 = vrot.lane.b32.xlu0 %v637, 127
      %v1288 = vpop.permute.xlu0 %1287
      %1289 = vrot.lane.b32.xlu0 %v639, 127
      %v1290 = vpop.permute.xlu0 %1289
      %1291 = vrot.lane.b32.xlu0 %v641, 127
      %v1292 = vpop.permute.xlu0 %1291
      %1293 = vrot.lane.b32.xlu0 %v643, 127
      %v1294 = vpop.permute.xlu0 %1293
      %1295 = vrot.lane.b32.xlu0 %v645, 127
      %v1296 = vpop.permute.xlu0 %1295
      %1297 = vrot.lane.b32.xlu0 %v632, 127
      %v1298 = vpop.permute.xlu0 %1297
      %1299 = vrot.lane.b32.xlu0 %v634, 127
      %v1300 = vpop.permute.xlu0 %1299
      %1301 = vrot.lane.b32.xlu0 %v636, 127
      %v1302 = vpop.permute.xlu0 %1301
      %1303 = vrot.lane.b32.xlu0 %v638, 127
      %v1304 = vpop.permute.xlu0 %1303
      %1305 = vrot.lane.b32.xlu0 %v640, 127
      %v1306 = vpop.permute.xlu0 %1305
      %1307 = vrot.lane.b32.xlu0 %v642, 127
      %v1308 = vpop.permute.xlu0 %1307
      %1309 = vrot.lane.b32.xlu0 %v644, 127
      %v1310 = vpop.permute.xlu0 %1309
      %1311 = vrot.lane.b32.xlu0 %v646, 127
      %v1312 = vpop.permute.xlu0 %1311
      %vm1313 = vcmp.lt.s32.totalorder %v692, 127
      %v1314 = vsel %vm1313, %v1282, %v1298
      %v1315 = vsel %vm1313, %v1284, %v1300
      %v1316 = vsel %vm1313, %v1286, %v1302
      %v1317 = vsel %vm1313, %v1288, %v1304
      %v1318 = vsel %vm1313, %v1290, %v1306
      %v1319 = vsel %vm1313, %v1292, %v1308
      %v1320 = vsel %vm1313, %v1294, %v1310
      %v1321 = vsel %vm1313, %v1296, %v1312
      %v1322 = vsel %vm1313, %v1298, %v1282
      %v1323 = vsel %vm1313, %v1300, %v1284
      %v1324 = vsel %vm1313, %v1302, %v1286
      %v1325 = vsel %vm1313, %v1304, %v1288
      %v1326 = vsel %vm1313, %v1306, %v1290
      %v1327 = vsel %vm1313, %v1308, %v1292
      %v1328 = vsel %vm1313, %v1310, %v1294
      %v1329 = vsel %vm1313, %v1312, %v1296
      %v1330 = vlaneseq
      %v1331 = vshrl.u32 %v1330, 7
      %v1332 = vsub.s32 5, %v1331
      %v1333 = vrot.slane %v647, %v1332
      %v1334 = vlaneseq
      %v1335 = vshrl.u32 %v1334, 7
      %v1336 = vsub.s32 5, %v1335
      %v1337 = vrot.slane %v648, %v1336
      %v1338 = vmul.f32 %v1314, %v1333
      %v1339 = vmul.f32 %v1322, %v1337
      %v1340 = vmul.f32 %v1315, %v1333
      %v1341 = vmul.f32 %v1323, %v1337
      %v1342 = vmul.f32 %v1316, %v1333
      %v1343 = vmul.f32 %v1324, %v1337
      %v1344 = vmul.f32 %v1317, %v1333
      %v1345 = vmul.f32 %v1325, %v1337
      %v1346 = vmul.f32 %v1318, %v1333
      %v1347 = vmul.f32 %v1326, %v1337
      %v1348 = vmul.f32 %v1319, %v1333
      %v1349 = vmul.f32 %v1327, %v1337
      %v1350 = vmul.f32 %v1320, %v1333
      %v1351 = vmul.f32 %v1328, %v1337
      %v1352 = vmul.f32 %v1321, %v1333
      %v1353 = vmul.f32 %v1329, %v1337
      %1354 = vset.pattern.permute.xlu0 5
      %1355 = vperm.xlu0 %1354, %v651
      %v1356 = vpop.permute.xlu0 %1355
      %1358 = vset.pattern.permute.xlu0 5
      %1359 = vperm.xlu0 %1358, %v652
      %v1360 = vpop.permute.xlu0 %1359
      %1362 = vset.pattern.permute.xlu0 5
      %1363 = vperm.xlu0 %1362, %v653
      %v1364 = vpop.permute.xlu0 %1363
      %1366 = vset.pattern.permute.xlu0 5
      %1367 = vperm.xlu0 %1366, %v654
      %v1368 = vpop.permute.xlu0 %1367
      %1370 = vset.pattern.permute.xlu0 5
      %1371 = vperm.xlu0 %1370, %v655
      %v1372 = vpop.permute.xlu0 %1371
      %1374 = vset.pattern.permute.xlu0 5
      %1375 = vperm.xlu0 %1374, %v656
      %v1376 = vpop.permute.xlu0 %1375
      %1378 = vset.pattern.permute.xlu0 5
      %1379 = vperm.xlu0 %1378, %v657
      %v1380 = vpop.permute.xlu0 %1379
      %1382 = vset.pattern.permute.xlu0 5
      %1383 = vperm.xlu0 %1382, %v658
      %v1384 = vpop.permute.xlu0 %1383
      %v1386 = vmul.f32 %v1338, %v1356
      %v1387 = vmul.f32 %v1339, %v1356
      %v1388 = vmul.f32 %v1340, %v1360
      %v1389 = vmul.f32 %v1341, %v1360
      %v1390 = vmul.f32 %v1342, %v1364
      %v1391 = vmul.f32 %v1343, %v1364
      %v1392 = vmul.f32 %v1344, %v1368
      %v1393 = vmul.f32 %v1345, %v1368
      %v1394 = vmul.f32 %v1346, %v1372
      %v1395 = vmul.f32 %v1347, %v1372
      %v1396 = vmul.f32 %v1348, %v1376
      %v1397 = vmul.f32 %v1349, %v1376
      %v1398 = vmul.f32 %v1350, %v1380
      %v1399 = vmul.f32 %v1351, %v1380
      %v1400 = vmul.f32 %v1352, %v1384
      %v1401 = vmul.f32 %v1353, %v1384
      %v1402 = vadd.f32 %v1265, %v1386
      %v1403 = vadd.f32 %v1266, %v1387
      %v1404 = vadd.f32 %v1267, %v1388
      %v1405 = vadd.f32 %v1268, %v1389
      %v1406 = vadd.f32 %v1269, %v1390
      %v1407 = vadd.f32 %v1270, %v1391
      %v1408 = vadd.f32 %v1271, %v1392
      %v1409 = vadd.f32 %v1272, %v1393
      %v1410 = vadd.f32 %v1273, %v1394
      %v1411 = vadd.f32 %v1274, %v1395
      %v1412 = vadd.f32 %v1275, %v1396
      %v1413 = vadd.f32 %v1276, %v1397
      %v1414 = vadd.f32 %v1277, %v1398
      %v1415 = vadd.f32 %v1278, %v1399
      %v1416 = vadd.f32 %v1279, %v1400
      %v1417 = vadd.f32 %v1280, %v1401
      %1418 = vrot.lane.b32.xlu0 %v631, 113
      %v1419 = vpop.permute.xlu0 %1418
      %1420 = vrot.lane.b32.xlu0 %v633, 113
      %v1421 = vpop.permute.xlu0 %1420
      %1422 = vrot.lane.b32.xlu0 %v635, 113
      %v1423 = vpop.permute.xlu0 %1422
      %1424 = vrot.lane.b32.xlu0 %v637, 113
      %v1425 = vpop.permute.xlu0 %1424
      %1426 = vrot.lane.b32.xlu0 %v639, 113
      %v1427 = vpop.permute.xlu0 %1426
      %1428 = vrot.lane.b32.xlu0 %v641, 113
      %v1429 = vpop.permute.xlu0 %1428
      %1430 = vrot.lane.b32.xlu0 %v643, 113
      %v1431 = vpop.permute.xlu0 %1430
      %1432 = vrot.lane.b32.xlu0 %v645, 113
      %v1433 = vpop.permute.xlu0 %1432
      %1434 = vrot.lane.b32.xlu0 %v632, 113
      %v1435 = vpop.permute.xlu0 %1434
      %1436 = vrot.lane.b32.xlu0 %v634, 113
      %v1437 = vpop.permute.xlu0 %1436
      %1438 = vrot.lane.b32.xlu0 %v636, 113
      %v1439 = vpop.permute.xlu0 %1438
      %1440 = vrot.lane.b32.xlu0 %v638, 113
      %v1441 = vpop.permute.xlu0 %1440
      %1442 = vrot.lane.b32.xlu0 %v640, 113
      %v1443 = vpop.permute.xlu0 %1442
      %1444 = vrot.lane.b32.xlu0 %v642, 113
      %v1445 = vpop.permute.xlu0 %1444
      %1446 = vrot.lane.b32.xlu0 %v644, 113
      %v1447 = vpop.permute.xlu0 %1446
      %1448 = vrot.lane.b32.xlu0 %v646, 113
      %v1449 = vpop.permute.xlu0 %1448
      %vm1450 = vcmp.lt.s32.totalorder %v692, 113
      %v1451 = vsel %vm1450, %v1419, %v1435
      %v1452 = vsel %vm1450, %v1421, %v1437
      %v1453 = vsel %vm1450, %v1423, %v1439
      %v1454 = vsel %vm1450, %v1425, %v1441
      %v1455 = vsel %vm1450, %v1427, %v1443
      %v1456 = vsel %vm1450, %v1429, %v1445
      %v1457 = vsel %vm1450, %v1431, %v1447
      %v1458 = vsel %vm1450, %v1433, %v1449
      %v1459 = vsel %vm1450, %v1435, %v1419
      %v1460 = vsel %vm1450, %v1437, %v1421
      %v1461 = vsel %vm1450, %v1439, %v1423
      %v1462 = vsel %vm1450, %v1441, %v1425
      %v1463 = vsel %vm1450, %v1443, %v1427
      %v1464 = vsel %vm1450, %v1445, %v1429
      %v1465 = vsel %vm1450, %v1447, %v1431
      %v1466 = vsel %vm1450, %v1449, %v1433
      %v1467 = vlaneseq
      %v1468 = vshrl.u32 %v1467, 7
      %v1469 = vsub.s32 6, %v1468
      %v1470 = vrot.slane %v647, %v1469
      %v1471 = vlaneseq
      %v1472 = vshrl.u32 %v1471, 7
      %v1473 = vsub.s32 6, %v1472
      %v1474 = vrot.slane %v648, %v1473
      %v1475 = vmul.f32 %v1451, %v1470
      %v1476 = vmul.f32 %v1459, %v1474
      %v1477 = vmul.f32 %v1452, %v1470
      %v1478 = vmul.f32 %v1460, %v1474
      %v1479 = vmul.f32 %v1453, %v1470
      %v1480 = vmul.f32 %v1461, %v1474
      %v1481 = vmul.f32 %v1454, %v1470
      %v1482 = vmul.f32 %v1462, %v1474
      %v1483 = vmul.f32 %v1455, %v1470
      %v1484 = vmul.f32 %v1463, %v1474
      %v1485 = vmul.f32 %v1456, %v1470
      %v1486 = vmul.f32 %v1464, %v1474
      %v1487 = vmul.f32 %v1457, %v1470
      %v1488 = vmul.f32 %v1465, %v1474
      %v1489 = vmul.f32 %v1458, %v1470
      %v1490 = vmul.f32 %v1466, %v1474
      %1491 = vset.pattern.permute.xlu0 6
      %1492 = vperm.xlu0 %1491, %v651
      %v1493 = vpop.permute.xlu0 %1492
      %1495 = vset.pattern.permute.xlu0 6
      %1496 = vperm.xlu0 %1495, %v652
      %v1497 = vpop.permute.xlu0 %1496
      %1499 = vset.pattern.permute.xlu0 6
      %1500 = vperm.xlu0 %1499, %v653
      %v1501 = vpop.permute.xlu0 %1500
      %1503 = vset.pattern.permute.xlu0 6
      %1504 = vperm.xlu0 %1503, %v654
      %v1505 = vpop.permute.xlu0 %1504
      %1507 = vset.pattern.permute.xlu0 6
      %1508 = vperm.xlu0 %1507, %v655
      %v1509 = vpop.permute.xlu0 %1508
      %1511 = vset.pattern.permute.xlu0 6
      %1512 = vperm.xlu0 %1511, %v656
      %v1513 = vpop.permute.xlu0 %1512
      %1515 = vset.pattern.permute.xlu0 6
      %1516 = vperm.xlu0 %1515, %v657
      %v1517 = vpop.permute.xlu0 %1516
      %1519 = vset.pattern.permute.xlu0 6
      %1520 = vperm.xlu0 %1519, %v658
      %v1521 = vpop.permute.xlu0 %1520
      %v1523 = vmul.f32 %v1475, %v1493
      %v1524 = vmul.f32 %v1476, %v1493
      %v1525 = vmul.f32 %v1477, %v1497
      %v1526 = vmul.f32 %v1478, %v1497
      %v1527 = vmul.f32 %v1479, %v1501
      %v1528 = vmul.f32 %v1480, %v1501
      %v1529 = vmul.f32 %v1481, %v1505
      %v1530 = vmul.f32 %v1482, %v1505
      %v1531 = vmul.f32 %v1483, %v1509
      %v1532 = vmul.f32 %v1484, %v1509
      %v1533 = vmul.f32 %v1485, %v1513
      %v1534 = vmul.f32 %v1486, %v1513
      %v1535 = vmul.f32 %v1487, %v1517
      %v1536 = vmul.f32 %v1488, %v1517
      %v1537 = vmul.f32 %v1489, %v1521
      %v1538 = vmul.f32 %v1490, %v1521
      %v1539 = vadd.f32 %v1402, %v1523
      %v1540 = vadd.f32 %v1403, %v1524
      %v1541 = vadd.f32 %v1404, %v1525
      %v1542 = vadd.f32 %v1405, %v1526
      %v1543 = vadd.f32 %v1406, %v1527
      %v1544 = vadd.f32 %v1407, %v1528
      %v1545 = vadd.f32 %v1408, %v1529
      %v1546 = vadd.f32 %v1409, %v1530
      %v1547 = vadd.f32 %v1410, %v1531
      %v1548 = vadd.f32 %v1411, %v1532
      %v1549 = vadd.f32 %v1412, %v1533
      %v1550 = vadd.f32 %v1413, %v1534
      %v1551 = vadd.f32 %v1414, %v1535
      %v1552 = vadd.f32 %v1415, %v1536
      %v1553 = vadd.f32 %v1416, %v1537
      %v1554 = vadd.f32 %v1417, %v1538
      %1555 = vrot.lane.b32.xlu0 %v631, 112
      %v1556 = vpop.permute.xlu0 %1555
      %1557 = vrot.lane.b32.xlu0 %v633, 112
      %v1558 = vpop.permute.xlu0 %1557
      %1559 = vrot.lane.b32.xlu0 %v635, 112
      %v1560 = vpop.permute.xlu0 %1559
      %1561 = vrot.lane.b32.xlu0 %v637, 112
      %v1562 = vpop.permute.xlu0 %1561
      %1563 = vrot.lane.b32.xlu0 %v639, 112
      %v1564 = vpop.permute.xlu0 %1563
      %1565 = vrot.lane.b32.xlu0 %v641, 112
      %v1566 = vpop.permute.xlu0 %1565
      %1567 = vrot.lane.b32.xlu0 %v643, 112
      %v1568 = vpop.permute.xlu0 %1567
      %1569 = vrot.lane.b32.xlu0 %v645, 112
      %v1570 = vpop.permute.xlu0 %1569
      %1571 = vrot.lane.b32.xlu0 %v632, 112
      %v1572 = vpop.permute.xlu0 %1571
      %1573 = vrot.lane.b32.xlu0 %v634, 112
      %v1574 = vpop.permute.xlu0 %1573
      %1575 = vrot.lane.b32.xlu0 %v636, 112
      %v1576 = vpop.permute.xlu0 %1575
      %1577 = vrot.lane.b32.xlu0 %v638, 112
      %v1578 = vpop.permute.xlu0 %1577
      %1579 = vrot.lane.b32.xlu0 %v640, 112
      %v1580 = vpop.permute.xlu0 %1579
      %1581 = vrot.lane.b32.xlu0 %v642, 112
      %v1582 = vpop.permute.xlu0 %1581
      %1583 = vrot.lane.b32.xlu0 %v644, 112
      %v1584 = vpop.permute.xlu0 %1583
      %1585 = vrot.lane.b32.xlu0 %v646, 112
      %v1586 = vpop.permute.xlu0 %1585
      %vm1587 = vcmp.lt.s32.totalorder %v692, 112
      %v1588 = vsel %vm1587, %v1556, %v1572
      %v1589 = vsel %vm1587, %v1558, %v1574
      %v1590 = vsel %vm1587, %v1560, %v1576
      %v1591 = vsel %vm1587, %v1562, %v1578
      %v1592 = vsel %vm1587, %v1564, %v1580
      %v1593 = vsel %vm1587, %v1566, %v1582
      %v1594 = vsel %vm1587, %v1568, %v1584
      %v1595 = vsel %vm1587, %v1570, %v1586
      %v1596 = vsel %vm1587, %v1572, %v1556
      %v1597 = vsel %vm1587, %v1574, %v1558
      %v1598 = vsel %vm1587, %v1576, %v1560
      %v1599 = vsel %vm1587, %v1578, %v1562
      %v1600 = vsel %vm1587, %v1580, %v1564
      %v1601 = vsel %vm1587, %v1582, %v1566
      %v1602 = vsel %vm1587, %v1584, %v1568
      %v1603 = vsel %vm1587, %v1586, %v1570
      %v1604 = vlaneseq
      %v1605 = vshrl.u32 %v1604, 7
      %v1606 = vsub.s32 7, %v1605
      %v1607 = vrot.slane %v647, %v1606
      %v1608 = vlaneseq
      %v1609 = vshrl.u32 %v1608, 7
      %v1610 = vsub.s32 7, %v1609
      %v1611 = vrot.slane %v648, %v1610
      %v1612 = vmul.f32 %v1588, %v1607
      %v1613 = vmul.f32 %v1596, %v1611
      %v1614 = vmul.f32 %v1589, %v1607
      %v1615 = vmul.f32 %v1597, %v1611
      %v1616 = vmul.f32 %v1590, %v1607
      %v1617 = vmul.f32 %v1598, %v1611
      %v1618 = vmul.f32 %v1591, %v1607
      %v1619 = vmul.f32 %v1599, %v1611
      %v1620 = vmul.f32 %v1592, %v1607
      %v1621 = vmul.f32 %v1600, %v1611
      %v1622 = vmul.f32 %v1593, %v1607
      %v1623 = vmul.f32 %v1601, %v1611
      %v1624 = vmul.f32 %v1594, %v1607
      %v1625 = vmul.f32 %v1602, %v1611
      %v1626 = vmul.f32 %v1595, %v1607
      %v1627 = vmul.f32 %v1603, %v1611
      %1628 = vset.pattern.permute.xlu0 7
      %1629 = vperm.xlu0 %1628, %v651
      %v1630 = vpop.permute.xlu0 %1629
      %1632 = vset.pattern.permute.xlu0 7
      %1633 = vperm.xlu0 %1632, %v652
      %v1634 = vpop.permute.xlu0 %1633
      %1636 = vset.pattern.permute.xlu0 7
      %1637 = vperm.xlu0 %1636, %v653
      %v1638 = vpop.permute.xlu0 %1637
      %1640 = vset.pattern.permute.xlu0 7
      %1641 = vperm.xlu0 %1640, %v654
      %v1642 = vpop.permute.xlu0 %1641
      %1644 = vset.pattern.permute.xlu0 7
      %1645 = vperm.xlu0 %1644, %v655
      %v1646 = vpop.permute.xlu0 %1645
      %1648 = vset.pattern.permute.xlu0 7
      %1649 = vperm.xlu0 %1648, %v656
      %v1650 = vpop.permute.xlu0 %1649
      %1652 = vset.pattern.permute.xlu0 7
      %1653 = vperm.xlu0 %1652, %v657
      %v1654 = vpop.permute.xlu0 %1653
      %1656 = vset.pattern.permute.xlu0 7
      %1657 = vperm.xlu0 %1656, %v658
      %v1658 = vpop.permute.xlu0 %1657
      %v1660 = vmul.f32 %v1612, %v1630
      %v1661 = vmul.f32 %v1613, %v1630
      %v1662 = vmul.f32 %v1614, %v1634
      %v1663 = vmul.f32 %v1615, %v1634
      %v1664 = vmul.f32 %v1616, %v1638
      %v1665 = vmul.f32 %v1617, %v1638
      %v1666 = vmul.f32 %v1618, %v1642
      %v1667 = vmul.f32 %v1619, %v1642
      %v1668 = vmul.f32 %v1620, %v1646
      %v1669 = vmul.f32 %v1621, %v1646
      %v1670 = vmul.f32 %v1622, %v1650
      %v1671 = vmul.f32 %v1623, %v1650
      %v1672 = vmul.f32 %v1624, %v1654
      %v1673 = vmul.f32 %v1625, %v1654
      %v1674 = vmul.f32 %v1626, %v1658
      %v1675 = vmul.f32 %v1627, %v1658
      %v1676 = vadd.f32 %v1539, %v1660
      %v1677 = vadd.f32 %v1540, %v1661
      %v1678 = vadd.f32 %v1541, %v1662
      %v1679 = vadd.f32 %v1542, %v1663
      %v1680 = vadd.f32 %v1543, %v1664
      %v1681 = vadd.f32 %v1544, %v1665
      %v1682 = vadd.f32 %v1545, %v1666
      %v1683 = vadd.f32 %v1546, %v1667
      %v1684 = vadd.f32 %v1547, %v1668
      %v1685 = vadd.f32 %v1548, %v1669
      %v1686 = vadd.f32 %v1549, %v1670
      %v1687 = vadd.f32 %v1550, %v1671
      %v1688 = vadd.f32 %v1551, %v1672
      %v1689 = vadd.f32 %v1552, %v1673
      %v1690 = vadd.f32 %v1553, %v1674
      %v1691 = vadd.f32 %v1554, %v1675
      %1692 = vrot.lane.b32.xlu0 %v631, 111
      %v1693 = vpop.permute.xlu0 %1692
      %1694 = vrot.lane.b32.xlu0 %v633, 111
      %v1695 = vpop.permute.xlu0 %1694
      %1696 = vrot.lane.b32.xlu0 %v635, 111
      %v1697 = vpop.permute.xlu0 %1696
      %1698 = vrot.lane.b32.xlu0 %v637, 111
      %v1699 = vpop.permute.xlu0 %1698
      %1700 = vrot.lane.b32.xlu0 %v639, 111
      %v1701 = vpop.permute.xlu0 %1700
      %1702 = vrot.lane.b32.xlu0 %v641, 111
      %v1703 = vpop.permute.xlu0 %1702
      %1704 = vrot.lane.b32.xlu0 %v643, 111
      %v1705 = vpop.permute.xlu0 %1704
      %1706 = vrot.lane.b32.xlu0 %v645, 111
      %v1707 = vpop.permute.xlu0 %1706
      %1708 = vrot.lane.b32.xlu0 %v632, 111
      %v1709 = vpop.permute.xlu0 %1708
      %1710 = vrot.lane.b32.xlu0 %v634, 111
      %v1711 = vpop.permute.xlu0 %1710
      %1712 = vrot.lane.b32.xlu0 %v636, 111
      %v1713 = vpop.permute.xlu0 %1712
      %1714 = vrot.lane.b32.xlu0 %v638, 111
      %v1715 = vpop.permute.xlu0 %1714
      %1716 = vrot.lane.b32.xlu0 %v640, 111
      %v1717 = vpop.permute.xlu0 %1716
      %1718 = vrot.lane.b32.xlu0 %v642, 111
      %v1719 = vpop.permute.xlu0 %1718
      %1720 = vrot.lane.b32.xlu0 %v644, 111
      %v1721 = vpop.permute.xlu0 %1720
      %1722 = vrot.lane.b32.xlu0 %v646, 111
      %v1723 = vpop.permute.xlu0 %1722
      %vm1724 = vcmp.lt.s32.totalorder %v692, 111
      %v1725 = vsel %vm1724, %v1693, %v1709
      %v1726 = vsel %vm1724, %v1695, %v1711
      %v1727 = vsel %vm1724, %v1697, %v1713
      %v1728 = vsel %vm1724, %v1699, %v1715
      %v1729 = vsel %vm1724, %v1701, %v1717
      %v1730 = vsel %vm1724, %v1703, %v1719
      %v1731 = vsel %vm1724, %v1705, %v1721
      %v1732 = vsel %vm1724, %v1707, %v1723
      %v1733 = vsel %vm1724, %v1709, %v1693
      %v1734 = vsel %vm1724, %v1711, %v1695
      %v1735 = vsel %vm1724, %v1713, %v1697
      %v1736 = vsel %vm1724, %v1715, %v1699
      %v1737 = vsel %vm1724, %v1717, %v1701
      %v1738 = vsel %vm1724, %v1719, %v1703
      %v1739 = vsel %vm1724, %v1721, %v1705
      %v1740 = vsel %vm1724, %v1723, %v1707
      %v1741 = vlaneseq
      %v1742 = vshrl.u32 %v1741, 7
      %v1743 = vsub.s32 0, %v1742
      %v1744 = vrot.slane %v649, %v1743
      %v1745 = vlaneseq
      %v1746 = vshrl.u32 %v1745, 7
      %v1747 = vsub.s32 0, %v1746
      %v1748 = vrot.slane %v650, %v1747
      %v1749 = vmul.f32 %v1725, %v1744
      %v1750 = vmul.f32 %v1733, %v1748
      %v1751 = vmul.f32 %v1726, %v1744
      %v1752 = vmul.f32 %v1734, %v1748
      %v1753 = vmul.f32 %v1727, %v1744
      %v1754 = vmul.f32 %v1735, %v1748
      %v1755 = vmul.f32 %v1728, %v1744
      %v1756 = vmul.f32 %v1736, %v1748
      %v1757 = vmul.f32 %v1729, %v1744
      %v1758 = vmul.f32 %v1737, %v1748
      %v1759 = vmul.f32 %v1730, %v1744
      %v1760 = vmul.f32 %v1738, %v1748
      %v1761 = vmul.f32 %v1731, %v1744
      %v1762 = vmul.f32 %v1739, %v1748
      %v1763 = vmul.f32 %v1732, %v1744
      %v1764 = vmul.f32 %v1740, %v1748
      %1765 = vset.pattern.permute.xlu0 8
      %1766 = vperm.xlu0 %1765, %v651
      %v1767 = vpop.permute.xlu0 %1766
      %1769 = vset.pattern.permute.xlu0 8
      %1770 = vperm.xlu0 %1769, %v652
      %v1771 = vpop.permute.xlu0 %1770
      %1773 = vset.pattern.permute.xlu0 8
      %1774 = vperm.xlu0 %1773, %v653
      %v1775 = vpop.permute.xlu0 %1774
      %1777 = vset.pattern.permute.xlu0 8
      %1778 = vperm.xlu0 %1777, %v654
      %v1779 = vpop.permute.xlu0 %1778
      %1781 = vset.pattern.permute.xlu0 8
      %1782 = vperm.xlu0 %1781, %v655
      %v1783 = vpop.permute.xlu0 %1782
      %1785 = vset.pattern.permute.xlu0 8
      %1786 = vperm.xlu0 %1785, %v656
      %v1787 = vpop.permute.xlu0 %1786
      %1789 = vset.pattern.permute.xlu0 8
      %1790 = vperm.xlu0 %1789, %v657
      %v1791 = vpop.permute.xlu0 %1790
      %1793 = vset.pattern.permute.xlu0 8
      %1794 = vperm.xlu0 %1793, %v658
      %v1795 = vpop.permute.xlu0 %1794
      %v1797 = vmul.f32 %v1749, %v1767
      %v1798 = vmul.f32 %v1750, %v1767
      %v1799 = vmul.f32 %v1751, %v1771
      %v1800 = vmul.f32 %v1752, %v1771
      %v1801 = vmul.f32 %v1753, %v1775
      %v1802 = vmul.f32 %v1754, %v1775
      %v1803 = vmul.f32 %v1755, %v1779
      %v1804 = vmul.f32 %v1756, %v1779
      %v1805 = vmul.f32 %v1757, %v1783
      %v1806 = vmul.f32 %v1758, %v1783
      %v1807 = vmul.f32 %v1759, %v1787
      %v1808 = vmul.f32 %v1760, %v1787
      %v1809 = vmul.f32 %v1761, %v1791
      %v1810 = vmul.f32 %v1762, %v1791
      %v1811 = vmul.f32 %v1763, %v1795
      %v1812 = vmul.f32 %v1764, %v1795
      %v1813 = vadd.f32 %v1676, %v1797
      %v1814 = vadd.f32 %v1677, %v1798
      %v1815 = vadd.f32 %v1678, %v1799
      %v1816 = vadd.f32 %v1679, %v1800
      %v1817 = vadd.f32 %v1680, %v1801
      %v1818 = vadd.f32 %v1681, %v1802
      %v1819 = vadd.f32 %v1682, %v1803
      %v1820 = vadd.f32 %v1683, %v1804
      %v1821 = vadd.f32 %v1684, %v1805
      %v1822 = vadd.f32 %v1685, %v1806
      %v1823 = vadd.f32 %v1686, %v1807
      %v1824 = vadd.f32 %v1687, %v1808
      %v1825 = vadd.f32 %v1688, %v1809
      %v1826 = vadd.f32 %v1689, %v1810
      %v1827 = vadd.f32 %v1690, %v1811
      %v1828 = vadd.f32 %v1691, %v1812
      %v1829 = vld [vmem:[%s5] sm:$0xff]
      %v1830 = vld [vmem:[%s5 + $0x8] sm:$0xff]
      %v1831 = vld [vmem:[%s5 + $0x10] sm:$0xff]
      %v1832 = vld [vmem:[%s5 + $0x18] sm:$0xff]
      %v1833 = vld [vmem:[%s5 + $0x20] sm:$0xff]
      %v1834 = vld [vmem:[%s5 + $0x28] sm:$0xff]
      %v1835 = vld [vmem:[%s5 + $0x30] sm:$0xff]
      %v1836 = vld [vmem:[%s5 + $0x38] sm:$0xff]
      %1838 = vset.pattern.permute.xlu0 0
      %1839 = vperm.xlu0 %1838, %v1829
      %v1840 = vpop.permute.xlu0 %1839
      %1843 = vset.pattern.permute.xlu0 0
      %1844 = vperm.xlu0 %1843, %v1830
      %v1845 = vpop.permute.xlu0 %1844
      %1848 = vset.pattern.permute.xlu0 0
      %1849 = vperm.xlu0 %1848, %v1831
      %v1850 = vpop.permute.xlu0 %1849
      %1853 = vset.pattern.permute.xlu0 0
      %1854 = vperm.xlu0 %1853, %v1832
      %v1855 = vpop.permute.xlu0 %1854
      %1858 = vset.pattern.permute.xlu0 0
      %1859 = vperm.xlu0 %1858, %v1833
      %v1860 = vpop.permute.xlu0 %1859
      %1863 = vset.pattern.permute.xlu0 0
      %1864 = vperm.xlu0 %1863, %v1834
      %v1865 = vpop.permute.xlu0 %1864
      %1868 = vset.pattern.permute.xlu0 0
      %1869 = vperm.xlu0 %1868, %v1835
      %v1870 = vpop.permute.xlu0 %1869
      %1873 = vset.pattern.permute.xlu0 0
      %1874 = vperm.xlu0 %1873, %v1836
      %v1875 = vpop.permute.xlu0 %1874
      %v1877 = vadd.f32 %v1813, %v1840
      %v1878 = vadd.f32 %v1814, %v1840
      %v1879 = vadd.f32 %v1815, %v1845
      %v1880 = vadd.f32 %v1816, %v1845
      %v1881 = vadd.f32 %v1817, %v1850
      %v1882 = vadd.f32 %v1818, %v1850
      %v1883 = vadd.f32 %v1819, %v1855
      %v1884 = vadd.f32 %v1820, %v1855
      %v1885 = vadd.f32 %v1821, %v1860
      %v1886 = vadd.f32 %v1822, %v1860
      %v1887 = vadd.f32 %v1823, %v1865
      %v1888 = vadd.f32 %v1824, %v1865
      %v1889 = vadd.f32 %v1825, %v1870
      %v1890 = vadd.f32 %v1826, %v1870
      %v1891 = vadd.f32 %v1827, %v1875
      %v1892 = vadd.f32 %v1828, %v1875
      %v1893 = vadd.f32 %v1877, 3.0
      %v1894 = vadd.f32 %v1878, 3.0
      %v1895 = vadd.f32 %v1879, 3.0
      %v1896 = vadd.f32 %v1880, 3.0
      %v1897 = vadd.f32 %v1881, 3.0
      %v1898 = vadd.f32 %v1882, 3.0
      %v1899 = vadd.f32 %v1883, 3.0
      %v1900 = vadd.f32 %v1884, 3.0
      %v1901 = vadd.f32 %v1885, 3.0
      %v1902 = vadd.f32 %v1886, 3.0
      %v1903 = vadd.f32 %v1887, 3.0
      %v1904 = vadd.f32 %v1888, 3.0
      %v1905 = vadd.f32 %v1889, 3.0
      %v1906 = vadd.f32 %v1890, 3.0
      %v1907 = vadd.f32 %v1891, 3.0
      %v1908 = vadd.f32 %v1892, 3.0
      %v1909 = vmax.f32 %v1893, 0.0
      %v1910 = vmax.f32 %v1894, 0.0
      %v1911 = vmax.f32 %v1895, 0.0
      %v1912 = vmax.f32 %v1896, 0.0
      %v1913 = vmax.f32 %v1897, 0.0
      %v1914 = vmax.f32 %v1898, 0.0
      %v1915 = vmax.f32 %v1899, 0.0
      %v1916 = vmax.f32 %v1900, 0.0
      %v1917 = vmax.f32 %v1901, 0.0
      %v1918 = vmax.f32 %v1902, 0.0
      %v1919 = vmax.f32 %v1903, 0.0
      %v1920 = vmax.f32 %v1904, 0.0
      %v1921 = vmax.f32 %v1905, 0.0
      %v1922 = vmax.f32 %v1906, 0.0
      %v1923 = vmax.f32 %v1907, 0.0
      %v1924 = vmax.f32 %v1908, 0.0
      %v1925 = vmin.f32 %v1909, 6.0
      %v1926 = vmin.f32 %v1910, 6.0
      %v1927 = vmin.f32 %v1911, 6.0
      %v1928 = vmin.f32 %v1912, 6.0
      %v1929 = vmin.f32 %v1913, 6.0
      %v1930 = vmin.f32 %v1914, 6.0
      %v1931 = vmin.f32 %v1915, 6.0
      %v1932 = vmin.f32 %v1916, 6.0
      %v1933 = vmin.f32 %v1917, 6.0
      %v1934 = vmin.f32 %v1918, 6.0
      %v1935 = vmin.f32 %v1919, 6.0
      %v1936 = vmin.f32 %v1920, 6.0
      %v1937 = vmin.f32 %v1921, 6.0
      %v1938 = vmin.f32 %v1922, 6.0
      %v1939 = vmin.f32 %v1923, 6.0
      %v1940 = vmin.f32 %v1924, 6.0
      %v1941 = vmul.f32 %v1877, %v1925
      %v1942 = vmul.f32 %v1878, %v1926
      %v1943 = vmul.f32 %v1879, %v1927
      %v1944 = vmul.f32 %v1880, %v1928
      %v1945 = vmul.f32 %v1881, %v1929
      %v1946 = vmul.f32 %v1882, %v1930
      %v1947 = vmul.f32 %v1883, %v1931
      %v1948 = vmul.f32 %v1884, %v1932
      %v1949 = vmul.f32 %v1885, %v1933
      %v1950 = vmul.f32 %v1886, %v1934
      %v1951 = vmul.f32 %v1887, %v1935
      %v1952 = vmul.f32 %v1888, %v1936
      %v1953 = vmul.f32 %v1889, %v1937
      %v1954 = vmul.f32 %v1890, %v1938
      %v1955 = vmul.f32 %v1891, %v1939
      %v1956 = vmul.f32 %v1892, %v1940
      %v1957 = vmul.f32 %v1941, 0.16666667
      %v1958 = vmul.f32 %v1942, 0.16666667
      %v1959 = vmul.f32 %v1943, 0.16666667
      %v1960 = vmul.f32 %v1944, 0.16666667
      %v1961 = vmul.f32 %v1945, 0.16666667
      %v1962 = vmul.f32 %v1946, 0.16666667
      %v1963 = vmul.f32 %v1947, 0.16666667
      %v1964 = vmul.f32 %v1948, 0.16666667
      %v1965 = vmul.f32 %v1949, 0.16666667
      %v1966 = vmul.f32 %v1950, 0.16666667
      %v1967 = vmul.f32 %v1951, 0.16666667
      %v1968 = vmul.f32 %v1952, 0.16666667
      %v1969 = vmul.f32 %v1953, 0.16666667
      %v1970 = vmul.f32 %v1954, 0.16666667
      %v1971 = vmul.f32 %v1955, 0.16666667
      %v1972 = vmul.f32 %v1956, 0.16666667
      %v1973 = vadd.f32 %v1957, %v1958
      %1974 = vadd.xlane.f32.xlu0 %v1973
      %v1975 = vpop.xlane.xlu0 %1974
      %v1976 = vadd.f32 %v1959, %v1960
      %1977 = vadd.xlane.f32.xlu0 %v1976
      %v1978 = vpop.xlane.xlu0 %1977
      %v1979 = vadd.f32 %v1961, %v1962
      %1980 = vadd.xlane.f32.xlu0 %v1979
      %v1981 = vpop.xlane.xlu0 %1980
      %v1982 = vadd.f32 %v1963, %v1964
      %1983 = vadd.xlane.f32.xlu0 %v1982
      %v1984 = vpop.xlane.xlu0 %1983
      %v1985 = vadd.f32 %v1965, %v1966
      %1986 = vadd.xlane.f32.xlu0 %v1985
      %v1987 = vpop.xlane.xlu0 %1986
      %v1988 = vadd.f32 %v1967, %v1968
      %1989 = vadd.xlane.f32.xlu0 %v1988
      %v1990 = vpop.xlane.xlu0 %1989
      %v1991 = vadd.f32 %v1969, %v1970
      %1992 = vadd.xlane.f32.xlu0 %v1991
      %v1993 = vpop.xlane.xlu0 %1992
      %v1994 = vadd.f32 %v1971, %v1972
      %1995 = vadd.xlane.f32.xlu0 %v1994
      %v1996 = vpop.xlane.xlu0 %1995
      %v1997 = vmul.f32 %v1975, 0.00390625
      %v1998 = vmul.f32 %v1978, 0.00390625
      %v1999 = vmul.f32 %v1981, 0.00390625
      %v2000 = vmul.f32 %v1984, 0.00390625
      %v2001 = vmul.f32 %v1987, 0.00390625
      %v2002 = vmul.f32 %v1990, 0.00390625
      %v2003 = vmul.f32 %v1993, 0.00390625
      %v2004 = vmul.f32 %v1996, 0.00390625
      %v2005 = vld [vmem:[%s6] sm:$0xff]
      %v2006 = vld [vmem:[%s6 + $0x8] sm:$0xff]
      %v2007 = vld [vmem:[%s6 + $0x10] sm:$0xff]
      %v2008 = vld [vmem:[%s6 + $0x18] sm:$0xff]
      %v2009 = vld [vmem:[%s6 + $0x20] sm:$0xff]
      %v2010 = vld [vmem:[%s6 + $0x28] sm:$0xff]
      %v2011 = vld [vmem:[%s6 + $0x30] sm:$0xff]
      %v2012 = vld [vmem:[%s6 + $0x38] sm:$0xff]
      %v2013 = vmul.f32 %v2005, %v1997
      %v2014 = vmul.f32 %v2006, %v1998
      %v2015 = vmul.f32 %v2007, %v1999
      %v2016 = vmul.f32 %v2008, %v2000
      %v2017 = vmul.f32 %v2009, %v2001
      %v2018 = vmul.f32 %v2010, %v2002
      %v2019 = vmul.f32 %v2011, %v2003
      %v2020 = vmul.f32 %v2012, %v2004
      %v2021 = vsel %vm481, %v2013, 0.0
      %v2022 = vsel %vm481, %v2014, 0.0
      %v2023 = vadd.f32 %v2021, %v2022
      %v2024 = vsel %vm481, %v2015, 0.0
      %v2025 = vadd.f32 %v2023, %v2024
      %v2026 = vsel %vm481, %v2016, 0.0
      %v2027 = vadd.f32 %v2025, %v2026
      %v2028 = vsel %vm481, %v2017, 0.0
      %v2029 = vadd.f32 %v2027, %v2028
      %v2030 = vsel %vm481, %v2018, 0.0
      %v2031 = vadd.f32 %v2029, %v2030
      %v2032 = vsel %vm481, %v2019, 0.0
      %v2033 = vadd.f32 %v2031, %v2032
      %v2034 = vsel %vm481, %v2020, 0.0
      %v2035 = vadd.f32 %v2033, %v2034
      %v2036 = vrot.slane %v2035, 4
      %v2037 = vadd.f32 %v2035, %v2036
      %v2038 = vrot.slane %v2037, 2
      %v2039 = vadd.f32 %v2037, %v2038
      %v2040 = vrot.slane %v2039, 1
      %v2041 = vadd.f32 %v2039, %v2040
      %v2042 = vld [vmem:[%s7] sm:$0x1]
      %v2043 = vadd.f32 %v2041, %v2042
      %v2044 = vmax.f32 %v2043, 0.0
      %v2045 = vld [vmem:[%s8] sm:$0xff]
      %v2046 = vld [vmem:[%s8 + $0x8] sm:$0xff]
      %v2047 = vld [vmem:[%s8 + $0x10] sm:$0xff]
      %v2048 = vld [vmem:[%s8 + $0x18] sm:$0xff]
      %v2049 = vld [vmem:[%s8 + $0x20] sm:$0xff]
      %v2050 = vld [vmem:[%s8 + $0x28] sm:$0xff]
      %v2051 = vld [vmem:[%s8 + $0x30] sm:$0xff]
      %v2052 = vld [vmem:[%s8 + $0x38] sm:$0xff]
      %v2053 = vlaneseq
      %v2054 = vshrl.u32 %v2053, 7
      %v2055 = vsub.s32 0, %v2054
      %v2056 = vrot.slane %v2044, %v2055
      %v2057 = vmul.f32 %v2045, %v2056
      %v2058 = vmul.f32 %v2046, %v2056
      %v2059 = vmul.f32 %v2047, %v2056
      %v2060 = vmul.f32 %v2048, %v2056
      %v2061 = vmul.f32 %v2049, %v2056
      %v2062 = vmul.f32 %v2050, %v2056
      %v2063 = vmul.f32 %v2051, %v2056
      %v2064 = vmul.f32 %v2052, %v2056
      %v2065 = vsel %vm481, %v2057, 0.0
      %2066 = vadd.xlane.f32.xlu0 %v2065
      %v2067 = vpop.xlane.xlu0 %2066
      %v2068 = vsel %vm481, %v2058, 0.0
      %2069 = vadd.xlane.f32.xlu0 %v2068
      %v2070 = vpop.xlane.xlu0 %2069
      %v2071 = vsel %vm481, %v2059, 0.0
      %2072 = vadd.xlane.f32.xlu0 %v2071
      %v2073 = vpop.xlane.xlu0 %2072
      %v2074 = vsel %vm481, %v2060, 0.0
      %2075 = vadd.xlane.f32.xlu0 %v2074
      %v2076 = vpop.xlane.xlu0 %2075
      %v2077 = vsel %vm481, %v2061, 0.0
      %2078 = vadd.xlane.f32.xlu0 %v2077
      %v2079 = vpop.xlane.xlu0 %2078
      %v2080 = vsel %vm481, %v2062, 0.0
      %2081 = vadd.xlane.f32.xlu0 %v2080
      %v2082 = vpop.xlane.xlu0 %2081
      %v2083 = vsel %vm481, %v2063, 0.0
      %2084 = vadd.xlane.f32.xlu0 %v2083
      %v2085 = vpop.xlane.xlu0 %2084
      %v2086 = vsel %vm481, %v2064, 0.0
      %2087 = vadd.xlane.f32.xlu0 %v2086
      %v2088 = vpop.xlane.xlu0 %2087
      %v2089 = vld [vmem:[%s9] sm:$0xff]
      %v2090 = vld [vmem:[%s9 + $0x8] sm:$0xff]
      %v2091 = vld [vmem:[%s9 + $0x10] sm:$0xff]
      %v2092 = vld [vmem:[%s9 + $0x18] sm:$0xff]
      %v2093 = vld [vmem:[%s9 + $0x20] sm:$0xff]
      %v2094 = vld [vmem:[%s9 + $0x28] sm:$0xff]
      %v2095 = vld [vmem:[%s9 + $0x30] sm:$0xff]
      %v2096 = vld [vmem:[%s9 + $0x38] sm:$0xff]
      %v2097 = vadd.f32 %v2067, %v2089
      %v2098 = vadd.f32 %v2070, %v2090
      %v2099 = vadd.f32 %v2073, %v2091
      %v2100 = vadd.f32 %v2076, %v2092
      %v2101 = vadd.f32 %v2079, %v2093
      %v2102 = vadd.f32 %v2082, %v2094
      %v2103 = vadd.f32 %v2085, %v2095
      %v2104 = vadd.f32 %v2088, %v2096
      %v2105 = vadd.f32 %v2097, 3.0
      %v2106 = vadd.f32 %v2098, 3.0
      %v2107 = vadd.f32 %v2099, 3.0
      %v2108 = vadd.f32 %v2100, 3.0
      %v2109 = vadd.f32 %v2101, 3.0
      %v2110 = vadd.f32 %v2102, 3.0
      %v2111 = vadd.f32 %v2103, 3.0
      %v2112 = vadd.f32 %v2104, 3.0
      %v2113 = vmax.f32 %v2105, 0.0
      %v2114 = vmax.f32 %v2106, 0.0
      %v2115 = vmax.f32 %v2107, 0.0
      %v2116 = vmax.f32 %v2108, 0.0
      %v2117 = vmax.f32 %v2109, 0.0
      %v2118 = vmax.f32 %v2110, 0.0
      %v2119 = vmax.f32 %v2111, 0.0
      %v2120 = vmax.f32 %v2112, 0.0
      %v2121 = vmin.f32 %v2113, 6.0
      %v2122 = vmin.f32 %v2114, 6.0
      %v2123 = vmin.f32 %v2115, 6.0
      %v2124 = vmin.f32 %v2116, 6.0
      %v2125 = vmin.f32 %v2117, 6.0
      %v2126 = vmin.f32 %v2118, 6.0
      %v2127 = vmin.f32 %v2119, 6.0
      %v2128 = vmin.f32 %v2120, 6.0
      %v2129 = vmul.f32 %v2121, 0.16666667
      %v2130 = vmul.f32 %v2122, 0.16666667
      %v2131 = vmul.f32 %v2123, 0.16666667
      %v2132 = vmul.f32 %v2124, 0.16666667
      %v2133 = vmul.f32 %v2125, 0.16666667
      %v2134 = vmul.f32 %v2126, 0.16666667
      %v2135 = vmul.f32 %v2127, 0.16666667
      %v2136 = vmul.f32 %v2128, 0.16666667
      %2138 = vset.pattern.permute.xlu0 0
      %2139 = vperm.xlu0 %2138, %v2129
      %v2140 = vpop.permute.xlu0 %2139
      %2143 = vset.pattern.permute.xlu0 0
      %2144 = vperm.xlu0 %2143, %v2130
      %v2145 = vpop.permute.xlu0 %2144
      %2148 = vset.pattern.permute.xlu0 0
      %2149 = vperm.xlu0 %2148, %v2131
      %v2150 = vpop.permute.xlu0 %2149
      %2153 = vset.pattern.permute.xlu0 0
      %2154 = vperm.xlu0 %2153, %v2132
      %v2155 = vpop.permute.xlu0 %2154
      %2158 = vset.pattern.permute.xlu0 0
      %2159 = vperm.xlu0 %2158, %v2133
      %v2160 = vpop.permute.xlu0 %2159
      %2163 = vset.pattern.permute.xlu0 0
      %2164 = vperm.xlu0 %2163, %v2134
      %v2165 = vpop.permute.xlu0 %2164
      %2168 = vset.pattern.permute.xlu0 0
      %2169 = vperm.xlu0 %2168, %v2135
      %v2170 = vpop.permute.xlu0 %2169
      %2173 = vset.pattern.permute.xlu0 0
      %2174 = vperm.xlu0 %2173, %v2136
      %v2175 = vpop.permute.xlu0 %2174
      %v2177 = vmul.f32 %v1957, %v2140
      %v2178 = vmul.f32 %v1958, %v2140
      %v2179 = vmul.f32 %v1959, %v2145
      %v2180 = vmul.f32 %v1960, %v2145
      %v2181 = vmul.f32 %v1961, %v2150
      %v2182 = vmul.f32 %v1962, %v2150
      %v2183 = vmul.f32 %v1963, %v2155
      %v2184 = vmul.f32 %v1964, %v2155
      %v2185 = vmul.f32 %v1965, %v2160
      %v2186 = vmul.f32 %v1966, %v2160
      %v2187 = vmul.f32 %v1967, %v2165
      %v2188 = vmul.f32 %v1968, %v2165
      %v2189 = vmul.f32 %v1969, %v2170
      %v2190 = vmul.f32 %v1970, %v2170
      %v2191 = vmul.f32 %v1971, %v2175
      %v2192 = vmul.f32 %v1972, %v2175
      %v2193 = vld [vmem:[%s10] sm:$0xff]
      %v2194 = vld [vmem:[%s10 + $0x8] sm:$0xff]
      %v2195 = vpack.c.bf16 %v2194, %v2193
      %v2196 = vpack.c.bf16 %v2179, %v2177
      %v2197 = vpack.c.bf16 %v2180, %v2178
      %v2198 = vpack.c.bf16 %v2183, %v2181
      %v2199 = vpack.c.bf16 %v2184, %v2182
      %v2200 = vpack.c.bf16 %v2187, %v2185
      %v2201 = vpack.c.bf16 %v2188, %v2186
      %v2202 = vpack.c.bf16 %v2191, %v2189
      %v2203 = vpack.c.bf16 %v2192, %v2190
      %v2204 = vld [vmem:[%s11] sm:$0xff]
      %v2205 = vld [vmem:[%s11 + $0x8] sm:$0xff]
      %2207 = vset.pattern.permute.xlu0 0
      %2208 = vperm.xlu0 %2207, %v2204
      %v2209 = vpop.permute.xlu0 %2208
      %2212 = vset.pattern.permute.xlu0 0
      %2213 = vperm.xlu0 %2212, %v2205
      %v2214 = vpop.permute.xlu0 %2213
      %vm2216 = vcmask 523264
      %v2218 = vsel %vm2216, %v2195, 0
      %2220 = vmatprep.subr.bf16.mxu0 %v2197
      %2221 = vmatpush1.bf16.msra.mxu0 %v2196
      %2222 = vmatprep.subr.bf16.mxu0 %v2199
      %2223 = vmatpush1.bf16.msra.mxu0 %v2198
      %2224 = vmatprep.subr.bf16.mxu0 %v2201
      %2225 = vmatpush1.bf16.msra.mxu0 %v2200
      %2226 = vmatprep.subr.bf16.mxu0 %v2203
      %2227 = vmatpush1.bf16.msra.mxu0 %v2202
      %2228 = vmatprep.subr.bf16.mxu0 0
      %2229 = vmatpush1.bf16.msra.mxu0 0
      %2230 = vmatprep.subr.bf16.mxu0 0
      %2231 = vmatpush1.bf16.msra.mxu0 0
      %2232 = vmatprep.subr.bf16.mxu0 0
      %2233 = vmatpush1.bf16.msra.mxu0 0
      %2234 = vmatprep.subr.bf16.mxu0 0
      %2235 = vmatpush1.bf16.msra.mxu0 0
      %2236 = vmatprep.subr.bf16.mxu0 0
      %2237 = vmatpush1.bf16.msra.mxu0 0
      %2238 = vmatprep.subr.bf16.mxu0 0
      %2239 = vmatpush1.bf16.msra.mxu0 0
      %2240 = vmatprep.subr.bf16.mxu0 0
      %2241 = vmatpush1.bf16.msra.mxu0 0
      %2242 = vmatprep.subr.bf16.mxu0 0
      %2243 = vmatpush1.bf16.msra.mxu0 0
      %2244 = vmatprep.subr.bf16.mxu0 0
      %2245 = vmatpush1.bf16.msra.mxu0 0
      %2246 = vmatprep.subr.bf16.mxu0 0
      %2247 = vmatpush1.bf16.msra.mxu0 0
      %2248 = vmatprep.subr.bf16.mxu0 0
      %2249 = vmatpush1.bf16.msra.mxu0 0
      %2250 = vmatprep.subr.bf16.mxu0 0
      %2251 = vmatpush1.bf16.msra.mxu0 0
      %2252 = vmatprep.mubr.bf16.mxu0 0
      %2253 = vmatmul.mubr.bf16.gmra.mrb[0].mxu0 %v2218
      %v2254 = vpop.f32.mrb[0].mxu0
      %v2255 = vadd.f32 %v2209, %v2254
      %v2256 = vpop.f32.mrb[0].mxu0
      %v2257 = vadd.f32 %v2209, %v2256
      %v2258 = vpop.f32.mrb[0].mxu0
      %v2259 = vadd.f32 %v2214, %v2258
      %v2260 = vpop.f32.mrb[0].mxu0
      %v2261 = vadd.f32 %v2214, %v2260
      %2262 = vdwg.mxu0
      %v2263 = vadd.f32 %v2255, %v415
      %v2264 = vadd.f32 %v2257, %v416
      %v2265 = vadd.f32 %v2259, %v417
      %v2266 = vadd.f32 %v2261, %v418
      %2267 = vst [vmem:[%s413] sm:$0xff] %v2263
      %2268 = vst [vmem:[%s413 + $0x8] sm:$0xff] %v2264
      %2269 = vst [vmem:[%s413 + $0x10] sm:$0xff] %v2265
      %2270 = vst [vmem:[%s413 + $0x18] sm:$0xff] %v2266
      %p2271 = scmp.lt.s32.totalorder %s23, 1
      %s2272 = scalar_select %p2271, %s23, 1
      %s2273 = smul.addr %s2272, 4
      %s2274 = smul.addr %s2273, 8
      %s2275 = scalar_lea.vmem %s12, %s2274
      // Predicated region
      $region69: #{inverted_residual_forward.1} parent=67 // pred_check
        %p2276 = pneg %p298
      $region70: #{inverted_residual_forward.1} parent=67 // pred_check_branch
        %2278 = sbr.rel (%p2276) target = $region72
      $region71: #{inverted_residual_forward.1} parent=67 // pred_region
        _
      $region72: #{inverted_residual_forward.1} parent=67 // pred_fallthru
        _
    $region68: #{inverted_residual_forward.1} parent=5 // pred_fallthru
      _
    %p2279 = scmp.le.s32.totalorder 2, %s18
    // Predicated region
    $region73: #{inverted_residual_forward.1} parent=5 // pred_check
      %p2280 = pneg %p2279
    $region74: #{inverted_residual_forward.1} parent=5 // pred_check_branch
      %2282 = sbr.rel (%p2280) target = $region76
    $region75: #{inverted_residual_forward.1} parent=5 // pred_region
      %s2283 = ssub.s32 %s18, 2
      // Predicated region
      $region77: #{inverted_residual_forward.1} parent=75 // pred_check
        %p2284 = pneg %p304
      $region78: #{inverted_residual_forward.1} parent=75 // pred_check_branch
        %2286 = sbr.rel (%p2284) target = $region80
      $region79: #{inverted_residual_forward.1} parent=75 // pred_region
        %p2287 = scmp.lt.s32.totalorder %s24, 1
        %s2288 = scalar_select %p2287, %s24, 1
        %s2289 = smul.addr %s2288, 4
        %s2290 = smul.addr %s2289, 8
        %s2291 = scalar_lea.vmem %s12, %s2290
      $region80: #{inverted_residual_forward.1} parent=75 // pred_fallthru
        _
    $region76: #{inverted_residual_forward.1} parent=5 // pred_fallthru
      _
  $region6: #{inverted_residual_forward.1} parent=0 // loop_footer
    %s22 = sadd.s32 1, %s18
  $region7: #{inverted_residual_forward.1} parent=0 // loop_footer_branch
    %17 = sbr.rel target = $region3
  $region8: #{inverted_residual_forward.1} parent=0 // loop_exit
    _

</llo_original>
